<compile_context>
chip_gen: v7x
topology: tpu7x:2x2x1
jax: 0.10.0
libtpu: 0.0.40
codegen_flags: <defaults>
</compile_context>

<pallas_src>
import jax
import jax.numpy as jnp
from jax import lax
from jax.experimental import pallas as pl
from jax.experimental.pallas import tpu as pltpu
import numpy as np


# ----------------------------- hyper-params ---------------------------------
OUT_CHANNELS = 8
SAMPLE_RATE = 16000
KERNEL_SIZE = 9            # odd, as SincNet assumes
MIN_LOW_HZ = 50.0
MIN_BAND_HZ = 50.0

TB = 8                     # batch rows per grid step (full sublane dim)
HALO = 128                 # lane-aligned zero halo for in-kernel "same" padding


# --------------------------- parameter init ---------------------------------
def to_mel(hz):
    return 2595.0 * jnp.log10(1.0 + hz / 700.0)


def to_hz(mel):
    return 700.0 * (jnp.power(10.0, mel / 2595.0) - 1.0)


def init_sinc_params(out_channels, sample_rate, kernel_size,
                     min_low_hz, min_band_hz):
    low_hz = float(min_low_hz)
    high_hz = sample_rate / 2.0 - (min_low_hz + min_band_hz)
    mel = jnp.linspace(to_mel(jnp.float32(low_hz)),
                       to_mel(jnp.float32(high_hz)),
                       out_channels + 1)
    hz = to_hz(mel)
    low_hz_ = hz[:-1][:, None].astype(jnp.float32)                 # (C, 1)
    band_hz_ = (hz[1:] - hz[:-1])[:, None].astype(jnp.float32)     # (C, 1)

    # torch.hamming_window(K, periodic=False)
    n = jnp.arange(kernel_size, dtype=jnp.float32)
    window_ = 0.54 - 0.46 * jnp.cos(2.0 * jnp.pi * n / (kernel_size - 1))
    window_ = window_[None, :].astype(jnp.float32)                 # (1, K)

    k = jnp.arange(-(kernel_size // 2), kernel_size // 2 + 1, dtype=jnp.float32)
    n_ = (2.0 * jnp.pi * k)[None, :] / float(sample_rate)          # (1, K)
    return low_hz_, band_hz_, window_, n_


# ----------------------------- Pallas kernel ---------------------------------
def sinc_conv_kernel(low_ref, band_ref, n_ref, win_ref, x_ref, o_ref, xp_scr):
    """Fused SincConv forward for one batch tile.

    low_ref:  (C, 1)           band_ref: (C, 1)
    n_ref:    (1, K)           win_ref:  (1, K)
    x_ref:    (TB, L)          raw waveform rows (no wrapper padding)
    o_ref:    (TB, C, L)       output block (lane-dense: L % 128 == 0 fast path)
    xp_scr:   (TB, L + 2*HALO) VMEM scratch holding the zero-halo'd window
    """
    TBk, L = x_ref.shape
    C = low_ref.shape[0]
    K = n_ref.shape[1]
    pad = (K - 1) // 2
    eps = 1e-08

    # -- 1) band-pass filter bank (C, K), built in vregs (fused; no HBM trip) ---
    low = MIN_LOW_HZ + jnp.abs(low_ref[...])                          # (C, 1)
    high = jnp.clip(low + MIN_BAND_HZ + jnp.abs(band_ref[...]),
                    MIN_LOW_HZ, SAMPLE_RATE / 2.0)                    # (C, 1)
    band = high - low                                                 # (C, 1)
    n_ = n_ref[...]                                                   # (1, K)
    f_times_t = low * n_                                              # (C, K)
    bp = (jnp.sin(f_times_t + band * n_) - jnp.sin(f_times_t)) / (n_ + eps)
    bp = bp * win_ref[...]
    filt = bp / (2.0 * band + eps)                                    # (C, K)

    # -- 2) "same" padding in-kernel: zero halo + aligned copy into VMEM scratch
    zeros_halo = jnp.zeros((TBk, HALO), jnp.float32)
    xp_scr[:, 0:HALO] = zeros_halo                                    # aligned store
    xp_scr[:, HALO + L:HALO + L + HALO] = zeros_halo                  # aligned store
    xp_scr[:, HALO:HALO + L] = x_ref[...]                             # aligned store

    # -- 3) MAC: out[b, c, t] = sum_k filt[c, k] * x[b, t + k - pad] ------------
    # Loop order: taps outer (K window loads + K hoisted filter-column
    # broadcasts), batch rows inner (keeps live vregs to ~TB accumulators).
    accs = [jnp.zeros((C, L), jnp.float32) for _ in range(TBk)]
    for k in range(K):                                 # static unroll, K small
        start = HALO - pad + k
        seg = xp_scr[:, start:start + L]               # (TB, L), one load per tap
        fcol = jnp.broadcast_to(filt[:, k:k + 1], (C, L))   # hoisted broadcast
        for b in range(TBk):
            accs[b] = accs[b] + fcol * seg[b:b + 1, :]       # (C,L) += (C,L)*(1,L)
    for b in range(TBk):
        o_ref[b, :, :] = accs[b].astype(o_ref.dtype)   # full-vreg, unmasked stores


# ------------------------------ wrapper --------------------------------------
def sinc_conv_forward(waveforms, low_hz_, band_hz_, window_, n_):
    """waveforms: (B, 1, L) float32 (PyTorch NCL).  Returns (B, C, L) float32."""
    B, in_ch, L = waveforms.shape
    assert in_ch == 1
    C = OUT_CHANNELS
    K = KERNEL_SIZE

    x2 = waveforms[:, 0, :].astype(jnp.float32)                  # (B, L)
    Bp = ((B + TB - 1) // TB) * TB
    if Bp != B:                                                  # batch tile padding only
        x2 = jnp.pad(x2, ((0, Bp - B), (0, 0)))
    num_steps = Bp // TB

    cost = pl.CostEstimate(
        flops=2 * Bp * C * K * L,
        transcendentals=2 * C * K * num_steps,
        bytes_accessed=Bp * L * 4 + Bp * C * L * 4,
    )

    out = pl.pallas_call(
        sinc_conv_kernel,
        out_shape=jax.ShapeDtypeStruct((Bp, C, L), jnp.float32),
        grid=(num_steps,),
        in_specs=[
            pl.BlockSpec((C, 1), lambda i: (0, 0)),              # low_hz_
            pl.BlockSpec((C, 1), lambda i: (0, 0)),              # band_hz_
            pl.BlockSpec((1, K), lambda i: (0, 0)),              # n_
            pl.BlockSpec((1, K), lambda i: (0, 0)),              # window_
            pl.BlockSpec((TB, L), lambda i: (i, 0)),             # waveform rows
        ],
        out_specs=pl.BlockSpec((TB, C, L), lambda i: (i, 0, 0)),
        scratch_shapes=[pltpu.VMEM((TB, L + 2 * HALO), jnp.float32)],
        compiler_params=pltpu.CompilerParams(
            dimension_semantics=("parallel",),
            vmem_limit_bytes=32 * 1024 * 1024),
        cost_estimate=cost,
    )(low_hz_, band_hz_, n_, window_, x2)

    if Bp != B:
        out = out[:B]
    return out


# ---------------------------- reference (JAX) ---------------------------------
def reference_forward(waveforms, low_hz_, band_hz_, window_, n_):
    low = MIN_LOW_HZ + jnp.abs(low_hz_)
    high = jnp.clip(low + MIN_BAND_HZ + jnp.abs(band_hz_),
                    MIN_LOW_HZ, SAMPLE_RATE / 2.0)
    band = (high - low)[:, 0]
    f_times_t = low * n_
    eps = 1e-08
    bp = (jnp.sin(f_times_t + band[:, None] * n_) - jnp.sin(f_times_t)) / (n_ + eps)
    bp = bp * window_
    bp = bp / (2.0 * band[:, None] + eps)
    filters = bp[:, None, :]                                     # (C, 1, K)
    pad = (KERNEL_SIZE - 1) // 2
    return lax.conv_general_dilated(
        waveforms, filters, window_strides=(1,), padding=[(pad, pad)],
        dimension_numbers=("NCH", "OIH", "NCH"),
        precision=lax.Precision.HIGHEST)


# --------------------------------- main ---------------------------------------
if __name__ == "__main__":
    key = jax.random.PRNGKey(0)
    B, L = 16, 256                       # small; 2 grid steps, L multiple of 128
    waveforms = jax.random.normal(key, (B, 1, L), dtype=jnp.float32)

    low_hz_, band_hz_, window_, n_ = init_sinc_params(
        OUT_CHANNELS, SAMPLE_RATE, KERNEL_SIZE, MIN_LOW_HZ, MIN_BAND_HZ)

    out = jax.block_until_ready(
        sinc_conv_forward(waveforms, low_hz_, band_hz_, window_, n_))

    ref = jax.block_until_ready(
        reference_forward(waveforms, low_hz_, band_hz_, window_, n_))

    np.testing.assert_allclose(np.asarray(out), np.asarray(ref),
                               rtol=1e-4, atol=1e-5)
    print("KERNEL_OK")
</pallas_src>

<mosaic_0001>
module attributes {stable_mosaic.version = 11 : i64} {
  func.func @sinc_conv_kernel(%arg0: i32, %arg1: memref<8x1xf32, #tpu.memory_space<vmem>>, %arg2: memref<8x1xf32, #tpu.memory_space<vmem>>, %arg3: memref<1x9xf32, #tpu.memory_space<vmem>>, %arg4: memref<1x9xf32, #tpu.memory_space<vmem>>, %arg5: memref<8x256xf32, #tpu.memory_space<vmem>>, %arg6: memref<8x8x256xf32, #tpu.memory_space<vmem>>, %arg7: memref<8x512xf32, #tpu.memory_space<vmem>>) attributes {dimension_semantics = [#tpu.dimension_semantics<parallel>], iteration_bounds = array<i64: 2>, scalar_prefetch = 0 : i64, scratch_operands = 1 : i64, tpu.core_type = #tpu.core_type<tc>, window_params = [{pipeline_mode = #tpu.pipeline_mode<synchronous>, transform_indices = @transform_0, window_bounds = array<i64: 8, 1>}, {pipeline_mode = #tpu.pipeline_mode<synchronous>, transform_indices = @transform_1, window_bounds = array<i64: 8, 1>}, {pipeline_mode = #tpu.pipeline_mode<synchronous>, transform_indices = @transform_2, window_bounds = array<i64: 1, 9>}, {pipeline_mode = #tpu.pipeline_mode<synchronous>, transform_indices = @transform_3, window_bounds = array<i64: 1, 9>}, {transform_indices = @transform_4, window_bounds = array<i64: 8, 256>}, {transform_indices = @transform_5, window_bounds = array<i64: 8, 8, 256>}]} {
    %c0 = arith.constant 0 : index
    %c0_0 = arith.constant 0 : index
    %0 = vector.load %arg1[%c0, %c0_0] : memref<8x1xf32, #tpu.memory_space<vmem>>, vector<8x1xf32>
    %1 = math.absf %0 : vector<8x1xf32>
    %cst = arith.constant 5.000000e+01 : f32
    %2 = vector.broadcast %cst : f32 to vector<8x1xf32>
    %3 = arith.addf %2, %1 : vector<8x1xf32>
    %cst_1 = arith.constant 5.000000e+01 : f32
    %4 = vector.broadcast %cst_1 : f32 to vector<8x1xf32>
    %5 = arith.addf %3, %4 : vector<8x1xf32>
    %c0_2 = arith.constant 0 : index
    %c0_3 = arith.constant 0 : index
    %6 = vector.load %arg2[%c0_2, %c0_3] : memref<8x1xf32, #tpu.memory_space<vmem>>, vector<8x1xf32>
    %7 = math.absf %6 : vector<8x1xf32>
    %8 = arith.addf %5, %7 : vector<8x1xf32>
    %cst_4 = arith.constant 5.000000e+01 : f32
    %cst_5 = arith.constant 8.000000e+03 : f32
    %9 = vector.broadcast %cst_4 : f32 to vector<8x1xf32>
    %10 = arith.maximumf %9, %8 : vector<8x1xf32>
    %11 = vector.broadcast %cst_5 : f32 to vector<8x1xf32>
    %12 = arith.minimumf %11, %10 : vector<8x1xf32>
    %13 = arith.subf %12, %3 : vector<8x1xf32>
    %c0_6 = arith.constant 0 : index
    %c0_7 = arith.constant 0 : index
    %14 = vector.load %arg3[%c0_6, %c0_7] : memref<1x9xf32, #tpu.memory_space<vmem>>, vector<1x9xf32>
    %15 = vector.broadcast %3 : vector<8x1xf32> to vector<8x9xf32>
    %16 = vector.broadcast %14 : vector<1x9xf32> to vector<8x9xf32>
    %17 = arith.mulf %15, %16 : vector<8x9xf32>
    %18 = vector.broadcast %13 : vector<8x1xf32> to vector<8x9xf32>
    %19 = vector.broadcast %14 : vector<1x9xf32> to vector<8x9xf32>
    %20 = arith.mulf %18, %19 : vector<8x9xf32>
    %21 = arith.addf %17, %20 : vector<8x9xf32>
    %22 = math.sin %21 : vector<8x9xf32>
    %23 = math.sin %17 : vector<8x9xf32>
    %24 = arith.subf %22, %23 : vector<8x9xf32>
    %cst_8 = arith.constant 9.99999993E-9 : f32
    %25 = vector.broadcast %cst_8 : f32 to vector<1x9xf32>
    %26 = arith.addf %14, %25 : vector<1x9xf32>
    %27 = vector.broadcast %26 : vector<1x9xf32> to vector<8x9xf32>
    %28 = arith.divf %24, %27 : vector<8x9xf32>
    %c0_9 = arith.constant 0 : index
    %c0_10 = arith.constant 0 : index
    %29 = vector.load %arg4[%c0_9, %c0_10] : memref<1x9xf32, #tpu.memory_space<vmem>>, vector<1x9xf32>
    %30 = vector.broadcast %29 : vector<1x9xf32> to vector<8x9xf32>
    %31 = arith.mulf %28, %30 : vector<8x9xf32>
    %cst_11 = arith.constant 2.000000e+00 : f32
    %32 = vector.broadcast %cst_11 : f32 to vector<8x1xf32>
    %33 = arith.mulf %32, %13 : vector<8x1xf32>
    %cst_12 = arith.constant 9.99999993E-9 : f32
    %34 = vector.broadcast %cst_12 : f32 to vector<8x1xf32>
    %35 = arith.addf %33, %34 : vector<8x1xf32>
    %36 = vector.broadcast %35 : vector<8x1xf32> to vector<8x9xf32>
    %37 = arith.divf %31, %36 : vector<8x9xf32>
    %cst_13 = arith.constant 0.000000e+00 : f32
    %38 = vector.broadcast %cst_13 : f32 to vector<8x128xf32>
    %c0_14 = arith.constant 0 : index
    %c0_15 = arith.constant 0 : index
    %39 = vector.load %arg7[%c0_14, %c0_15] : memref<8x512xf32, #tpu.memory_space<vmem>>, vector<8x128xf32>
    tpu.vector_store %arg7[%c0_14, %c0_15], %38 {strides = array<i32>} : memref<8x512xf32, #tpu.memory_space<vmem>>, vector<8x128xf32>,
    %c0_16 = arith.constant 0 : index
    %c384 = arith.constant 384 : index
    %40 = vector.load %arg7[%c0_16, %c384] : memref<8x512xf32, #tpu.memory_space<vmem>>, vector<8x128xf32>
    tpu.vector_store %arg7[%c0_16, %c384], %38 {strides = array<i32>} : memref<8x512xf32, #tpu.memory_space<vmem>>, vector<8x128xf32>,
    %c0_17 = arith.constant 0 : index
    %c0_18 = arith.constant 0 : index
    %41 = vector.load %arg5[%c0_17, %c0_18] : memref<8x256xf32, #tpu.memory_space<vmem>>, vector<8x256xf32>
    %c0_19 = arith.constant 0 : index
    %c128 = arith.constant 128 : index
    %42 = vector.load %arg7[%c0_19, %c128] : memref<8x512xf32, #tpu.memory_space<vmem>>, vector<8x256xf32>
    tpu.vector_store %arg7[%c0_19, %c128], %41 {strides = array<i32>} : memref<8x512xf32, #tpu.memory_space<vmem>>, vector<8x256xf32>,
    %cst_20 = arith.constant 0.000000e+00 : f32
    %43 = vector.broadcast %cst_20 : f32 to vector<8x256xf32>
    %cst_21 = arith.constant 0.000000e+00 : f32
    %44 = vector.broadcast %cst_21 : f32 to vector<8x256xf32>
    %cst_22 = arith.constant 0.000000e+00 : f32
    %45 = vector.broadcast %cst_22 : f32 to vector<8x256xf32>
    %cst_23 = arith.constant 0.000000e+00 : f32
    %46 = vector.broadcast %cst_23 : f32 to vector<8x256xf32>
    %cst_24 = arith.constant 0.000000e+00 : f32
    %47 = vector.broadcast %cst_24 : f32 to vector<8x256xf32>
    %cst_25 = arith.constant 0.000000e+00 : f32
    %48 = vector.broadcast %cst_25 : f32 to vector<8x256xf32>
    %cst_26 = arith.constant 0.000000e+00 : f32
    %49 = vector.broadcast %cst_26 : f32 to vector<8x256xf32>
    %cst_27 = arith.constant 0.000000e+00 : f32
    %50 = vector.broadcast %cst_27 : f32 to vector<8x256xf32>
    %c0_28 = arith.constant 0 : index
    %c124 = arith.constant 124 : index
    %51 = vector.load %arg7[%c0_28, %c124] : memref<8x512xf32, #tpu.memory_space<vmem>>, vector<8x256xf32>
    %52 = vector.extract_strided_slice %37 {offsets = [0, 0], sizes = [8, 1], strides = [1, 1]} : vector<8x9xf32> to vector<8x1xf32>
    %53 = vector.shape_cast %52 : vector<8x1xf32> to vector<8x1xf32>
    %54 = vector.broadcast %53 : vector<8x1xf32> to vector<8x256xf32>
    %55 = vector.extract_strided_slice %51 {offsets = [0, 0], sizes = [1, 256], strides = [1, 1]} : vector<8x256xf32> to vector<1x256xf32>
    %56 = vector.broadcast %55 : vector<1x256xf32> to vector<8x256xf32>
    %57 = arith.mulf %54, %56 : vector<8x256xf32>
    %58 = arith.addf %43, %57 : vector<8x256xf32>
    %59 = vector.extract_strided_slice %51 {offsets = [1, 0], sizes = [1, 256], strides = [1, 1]} : vector<8x256xf32> to vector<1x256xf32>
    %60 = vector.broadcast %59 : vector<1x256xf32> to vector<8x256xf32>
    %61 = arith.mulf %54, %60 : vector<8x256xf32>
    %62 = arith.addf %44, %61 : vector<8x256xf32>
    %63 = vector.extract_strided_slice %51 {offsets = [2, 0], sizes = [1, 256], strides = [1, 1]} : vector<8x256xf32> to vector<1x256xf32>
    %64 = vector.broadcast %63 : vector<1x256xf32> to vector<8x256xf32>
    %65 = arith.mulf %54, %64 : vector<8x256xf32>
    %66 = arith.addf %45, %65 : vector<8x256xf32>
    %67 = vector.extract_strided_slice %51 {offsets = [3, 0], sizes = [1, 256], strides = [1, 1]} : vector<8x256xf32> to vector<1x256xf32>
    %68 = vector.broadcast %67 : vector<1x256xf32> to vector<8x256xf32>
    %69 = arith.mulf %54, %68 : vector<8x256xf32>
    %70 = arith.addf %46, %69 : vector<8x256xf32>
    %71 = vector.extract_strided_slice %51 {offsets = [4, 0], sizes = [1, 256], strides = [1, 1]} : vector<8x256xf32> to vector<1x256xf32>
    %72 = vector.broadcast %71 : vector<1x256xf32> to vector<8x256xf32>
    %73 = arith.mulf %54, %72 : vector<8x256xf32>
    %74 = arith.addf %47, %73 : vector<8x256xf32>
    %75 = vector.extract_strided_slice %51 {offsets = [5, 0], sizes = [1, 256], strides = [1, 1]} : vector<8x256xf32> to vector<1x256xf32>
    %76 = vector.broadcast %75 : vector<1x256xf32> to vector<8x256xf32>
    %77 = arith.mulf %54, %76 : vector<8x256xf32>
    %78 = arith.addf %48, %77 : vector<8x256xf32>
    %79 = vector.extract_strided_slice %51 {offsets = [6, 0], sizes = [1, 256], strides = [1, 1]} : vector<8x256xf32> to vector<1x256xf32>
    %80 = vector.broadcast %79 : vector<1x256xf32> to vector<8x256xf32>
    %81 = arith.mulf %54, %80 : vector<8x256xf32>
    %82 = arith.addf %49, %81 : vector<8x256xf32>
    %83 = vector.extract_strided_slice %51 {offsets = [7, 0], sizes = [1, 256], strides = [1, 1]} : vector<8x256xf32> to vector<1x256xf32>
    %84 = vector.broadcast %83 : vector<1x256xf32> to vector<8x256xf32>
    %85 = arith.mulf %54, %84 : vector<8x256xf32>
    %86 = arith.addf %50, %85 : vector<8x256xf32>
    %c0_29 = arith.constant 0 : index
    %c125 = arith.constant 125 : index
    %87 = vector.load %arg7[%c0_29, %c125] : memref<8x512xf32, #tpu.memory_space<vmem>>, vector<8x256xf32>
    %88 = vector.extract_strided_slice %37 {offsets = [0, 1], sizes = [8, 1], strides = [1, 1]} : vector<8x9xf32> to vector<8x1xf32>
    %89 = vector.shape_cast %88 : vector<8x1xf32> to vector<8x1xf32>
    %90 = vector.broadcast %89 : vector<8x1xf32> to vector<8x256xf32>
    %91 = vector.extract_strided_slice %87 {offsets = [0, 0], sizes = [1, 256], strides = [1, 1]} : vector<8x256xf32> to vector<1x256xf32>
    %92 = vector.broadcast %91 : vector<1x256xf32> to vector<8x256xf32>
    %93 = arith.mulf %90, %92 : vector<8x256xf32>
    %94 = arith.addf %58, %93 : vector<8x256xf32>
    %95 = vector.extract_strided_slice %87 {offsets = [1, 0], sizes = [1, 256], strides = [1, 1]} : vector<8x256xf32> to vector<1x256xf32>
    %96 = vector.broadcast %95 : vector<1x256xf32> to vector<8x256xf32>
    %97 = arith.mulf %90, %96 : vector<8x256xf32>
    %98 = arith.addf %62, %97 : vector<8x256xf32>
    %99 = vector.extract_strided_slice %87 {offsets = [2, 0], sizes = [1, 256], strides = [1, 1]} : vector<8x256xf32> to vector<1x256xf32>
    %100 = vector.broadcast %99 : vector<1x256xf32> to vector<8x256xf32>
    %101 = arith.mulf %90, %100 : vector<8x256xf32>
    %102 = arith.addf %66, %101 : vector<8x256xf32>
    %103 = vector.extract_strided_slice %87 {offsets = [3, 0], sizes = [1, 256], strides = [1, 1]} : vector<8x256xf32> to vector<1x256xf32>
    %104 = vector.broadcast %103 : vector<1x256xf32> to vector<8x256xf32>
    %105 = arith.mulf %90, %104 : vector<8x256xf32>
    %106 = arith.addf %70, %105 : vector<8x256xf32>
    %107 = vector.extract_strided_slice %87 {offsets = [4, 0], sizes = [1, 256], strides = [1, 1]} : vector<8x256xf32> to vector<1x256xf32>
    %108 = vector.broadcast %107 : vector<1x256xf32> to vector<8x256xf32>
    %109 = arith.mulf %90, %108 : vector<8x256xf32>
    %110 = arith.addf %74, %109 : vector<8x256xf32>
    %111 = vector.extract_strided_slice %87 {offsets = [5, 0], sizes = [1, 256], strides = [1, 1]} : vector<8x256xf32> to vector<1x256xf32>
    %112 = vector.broadcast %111 : vector<1x256xf32> to vector<8x256xf32>
    %113 = arith.mulf %90, %112 : vector<8x256xf32>
    %114 = arith.addf %78, %113 : vector<8x256xf32>
    %115 = vector.extract_strided_slice %87 {offsets = [6, 0], sizes = [1, 256], strides = [1, 1]} : vector<8x256xf32> to vector<1x256xf32>
    %116 = vector.broadcast %115 : vector<1x256xf32> to vector<8x256xf32>
    %117 = arith.mulf %90, %116 : vector<8x256xf32>
    %118 = arith.addf %82, %117 : vector<8x256xf32>
    %119 = vector.extract_strided_slice %87 {offsets = [7, 0], sizes = [1, 256], strides = [1, 1]} : vector<8x256xf32> to vector<1x256xf32>
    %120 = vector.broadcast %119 : vector<1x256xf32> to vector<8x256xf32>
    %121 = arith.mulf %90, %120 : vector<8x256xf32>
    %122 = arith.addf %86, %121 : vector<8x256xf32>
    %c0_30 = arith.constant 0 : index
    %c126 = arith.constant 126 : index
    %123 = vector.load %arg7[%c0_30, %c126] : memref<8x512xf32, #tpu.memory_space<vmem>>, vector<8x256xf32>
    %124 = vector.extract_strided_slice %37 {offsets = [0, 2], sizes = [8, 1], strides = [1, 1]} : vector<8x9xf32> to vector<8x1xf32>
    %125 = vector.shape_cast %124 : vector<8x1xf32> to vector<8x1xf32>
    %126 = vector.broadcast %125 : vector<8x1xf32> to vector<8x256xf32>
    %127 = vector.extract_strided_slice %123 {offsets = [0, 0], sizes = [1, 256], strides = [1, 1]} : vector<8x256xf32> to vector<1x256xf32>
    %128 = vector.broadcast %127 : vector<1x256xf32> to vector<8x256xf32>
    %129 = arith.mulf %126, %128 : vector<8x256xf32>
    %130 = arith.addf %94, %129 : vector<8x256xf32>
    %131 = vector.extract_strided_slice %123 {offsets = [1, 0], sizes = [1, 256], strides = [1, 1]} : vector<8x256xf32> to vector<1x256xf32>
    %132 = vector.broadcast %131 : vector<1x256xf32> to vector<8x256xf32>
    %133 = arith.mulf %126, %132 : vector<8x256xf32>
    %134 = arith.addf %98, %133 : vector<8x256xf32>
    %135 = vector.extract_strided_slice %123 {offsets = [2, 0], sizes = [1, 256], strides = [1, 1]} : vector<8x256xf32> to vector<1x256xf32>
    %136 = vector.broadcast %135 : vector<1x256xf32> to vector<8x256xf32>
    %137 = arith.mulf %126, %136 : vector<8x256xf32>
    %138 = arith.addf %102, %137 : vector<8x256xf32>
    %139 = vector.extract_strided_slice %123 {offsets = [3, 0], sizes = [1, 256], strides = [1, 1]} : vector<8x256xf32> to vector<1x256xf32>
    %140 = vector.broadcast %139 : vector<1x256xf32> to vector<8x256xf32>
    %141 = arith.mulf %126, %140 : vector<8x256xf32>
    %142 = arith.addf %106, %141 : vector<8x256xf32>
    %143 = vector.extract_strided_slice %123 {offsets = [4, 0], sizes = [1, 256], strides = [1, 1]} : vector<8x256xf32> to vector<1x256xf32>
    %144 = vector.broadcast %143 : vector<1x256xf32> to vector<8x256xf32>
    %145 = arith.mulf %126, %144 : vector<8x256xf32>
    %146 = arith.addf %110, %145 : vector<8x256xf32>
    %147 = vector.extract_strided_slice %123 {offsets = [5, 0], sizes = [1, 256], strides = [1, 1]} : vector<8x256xf32> to vector<1x256xf32>
    %148 = vector.broadcast %147 : vector<1x256xf32> to vector<8x256xf32>
    %149 = arith.mulf %126, %148 : vector<8x256xf32>
    %150 = arith.addf %114, %149 : vector<8x256xf32>
    %151 = vector.extract_strided_slice %123 {offsets = [6, 0], sizes = [1, 256], strides = [1, 1]} : vector<8x256xf32> to vector<1x256xf32>
    %152 = vector.broadcast %151 : vector<1x256xf32> to vector<8x256xf32>
    %153 = arith.mulf %126, %152 : vector<8x256xf32>
    %154 = arith.addf %118, %153 : vector<8x256xf32>
    %155 = vector.extract_strided_slice %123 {offsets = [7, 0], sizes = [1, 256], strides = [1, 1]} : vector<8x256xf32> to vector<1x256xf32>
    %156 = vector.broadcast %155 : vector<1x256xf32> to vector<8x256xf32>
    %157 = arith.mulf %126, %156 : vector<8x256xf32>
    %158 = arith.addf %122, %157 : vector<8x256xf32>
    %c0_31 = arith.constant 0 : index
    %c127 = arith.constant 127 : index
    %159 = vector.load %arg7[%c0_31, %c127] : memref<8x512xf32, #tpu.memory_space<vmem>>, vector<8x256xf32>
    %160 = vector.extract_strided_slice %37 {offsets = [0, 3], sizes = [8, 1], strides = [1, 1]} : vector<8x9xf32> to vector<8x1xf32>
    %161 = vector.shape_cast %160 : vector<8x1xf32> to vector<8x1xf32>
    %162 = vector.broadcast %161 : vector<8x1xf32> to vector<8x256xf32>
    %163 = vector.extract_strided_slice %159 {offsets = [0, 0], sizes = [1, 256], strides = [1, 1]} : vector<8x256xf32> to vector<1x256xf32>
    %164 = vector.broadcast %163 : vector<1x256xf32> to vector<8x256xf32>
    %165 = arith.mulf %162, %164 : vector<8x256xf32>
    %166 = arith.addf %130, %165 : vector<8x256xf32>
    %167 = vector.extract_strided_slice %159 {offsets = [1, 0], sizes = [1, 256], strides = [1, 1]} : vector<8x256xf32> to vector<1x256xf32>
    %168 = vector.broadcast %167 : vector<1x256xf32> to vector<8x256xf32>
    %169 = arith.mulf %162, %168 : vector<8x256xf32>
    %170 = arith.addf %134, %169 : vector<8x256xf32>
    %171 = vector.extract_strided_slice %159 {offsets = [2, 0], sizes = [1, 256], strides = [1, 1]} : vector<8x256xf32> to vector<1x256xf32>
    %172 = vector.broadcast %171 : vector<1x256xf32> to vector<8x256xf32>
    %173 = arith.mulf %162, %172 : vector<8x256xf32>
    %174 = arith.addf %138, %173 : vector<8x256xf32>
    %175 = vector.extract_strided_slice %159 {offsets = [3, 0], sizes = [1, 256], strides = [1, 1]} : vector<8x256xf32> to vector<1x256xf32>
    %176 = vector.broadcast %175 : vector<1x256xf32> to vector<8x256xf32>
    %177 = arith.mulf %162, %176 : vector<8x256xf32>
    %178 = arith.addf %142, %177 : vector<8x256xf32>
    %179 = vector.extract_strided_slice %159 {offsets = [4, 0], sizes = [1, 256], strides = [1, 1]} : vector<8x256xf32> to vector<1x256xf32>
    %180 = vector.broadcast %179 : vector<1x256xf32> to vector<8x256xf32>
    %181 = arith.mulf %162, %180 : vector<8x256xf32>
    %182 = arith.addf %146, %181 : vector<8x256xf32>
    %183 = vector.extract_strided_slice %159 {offsets = [5, 0], sizes = [1, 256], strides = [1, 1]} : vector<8x256xf32> to vector<1x256xf32>
    %184 = vector.broadcast %183 : vector<1x256xf32> to vector<8x256xf32>
    %185 = arith.mulf %162, %184 : vector<8x256xf32>
    %186 = arith.addf %150, %185 : vector<8x256xf32>
    %187 = vector.extract_strided_slice %159 {offsets = [6, 0], sizes = [1, 256], strides = [1, 1]} : vector<8x256xf32> to vector<1x256xf32>
    %188 = vector.broadcast %187 : vector<1x256xf32> to vector<8x256xf32>
    %189 = arith.mulf %162, %188 : vector<8x256xf32>
    %190 = arith.addf %154, %189 : vector<8x256xf32>
    %191 = vector.extract_strided_slice %159 {offsets = [7, 0], sizes = [1, 256], strides = [1, 1]} : vector<8x256xf32> to vector<1x256xf32>
    %192 = vector.broadcast %191 : vector<1x256xf32> to vector<8x256xf32>
    %193 = arith.mulf %162, %192 : vector<8x256xf32>
    %194 = arith.addf %158, %193 : vector<8x256xf32>
    %c0_32 = arith.constant 0 : index
    %c128_33 = arith.constant 128 : index
    %195 = vector.load %arg7[%c0_32, %c128_33] : memref<8x512xf32, #tpu.memory_space<vmem>>, vector<8x256xf32>
    %196 = vector.extract_strided_slice %37 {offsets = [0, 4], sizes = [8, 1], strides = [1, 1]} : vector<8x9xf32> to vector<8x1xf32>
    %197 = vector.shape_cast %196 : vector<8x1xf32> to vector<8x1xf32>
    %198 = vector.broadcast %197 : vector<8x1xf32> to vector<8x256xf32>
    %199 = vector.extract_strided_slice %195 {offsets = [0, 0], sizes = [1, 256], strides = [1, 1]} : vector<8x256xf32> to vector<1x256xf32>
    %200 = vector.broadcast %199 : vector<1x256xf32> to vector<8x256xf32>
    %201 = arith.mulf %198, %200 : vector<8x256xf32>
    %202 = arith.addf %166, %201 : vector<8x256xf32>
    %203 = vector.extract_strided_slice %195 {offsets = [1, 0], sizes = [1, 256], strides = [1, 1]} : vector<8x256xf32> to vector<1x256xf32>
    %204 = vector.broadcast %203 : vector<1x256xf32> to vector<8x256xf32>
    %205 = arith.mulf %198, %204 : vector<8x256xf32>
    %206 = arith.addf %170, %205 : vector<8x256xf32>
    %207 = vector.extract_strided_slice %195 {offsets = [2, 0], sizes = [1, 256], strides = [1, 1]} : vector<8x256xf32> to vector<1x256xf32>
    %208 = vector.broadcast %207 : vector<1x256xf32> to vector<8x256xf32>
    %209 = arith.mulf %198, %208 : vector<8x256xf32>
    %210 = arith.addf %174, %209 : vector<8x256xf32>
    %211 = vector.extract_strided_slice %195 {offsets = [3, 0], sizes = [1, 256], strides = [1, 1]} : vector<8x256xf32> to vector<1x256xf32>
    %212 = vector.broadcast %211 : vector<1x256xf32> to vector<8x256xf32>
    %213 = arith.mulf %198, %212 : vector<8x256xf32>
    %214 = arith.addf %178, %213 : vector<8x256xf32>
    %215 = vector.extract_strided_slice %195 {offsets = [4, 0], sizes = [1, 256], strides = [1, 1]} : vector<8x256xf32> to vector<1x256xf32>
    %216 = vector.broadcast %215 : vector<1x256xf32> to vector<8x256xf32>
    %217 = arith.mulf %198, %216 : vector<8x256xf32>
    %218 = arith.addf %182, %217 : vector<8x256xf32>
    %219 = vector.extract_strided_slice %195 {offsets = [5, 0], sizes = [1, 256], strides = [1, 1]} : vector<8x256xf32> to vector<1x256xf32>
    %220 = vector.broadcast %219 : vector<1x256xf32> to vector<8x256xf32>
    %221 = arith.mulf %198, %220 : vector<8x256xf32>
    %222 = arith.addf %186, %221 : vector<8x256xf32>
    %223 = vector.extract_strided_slice %195 {offsets = [6, 0], sizes = [1, 256], strides = [1, 1]} : vector<8x256xf32> to vector<1x256xf32>
    %224 = vector.broadcast %223 : vector<1x256xf32> to vector<8x256xf32>
    %225 = arith.mulf %198, %224 : vector<8x256xf32>
    %226 = arith.addf %190, %225 : vector<8x256xf32>
    %227 = vector.extract_strided_slice %195 {offsets = [7, 0], sizes = [1, 256], strides = [1, 1]} : vector<8x256xf32> to vector<1x256xf32>
    %228 = vector.broadcast %227 : vector<1x256xf32> to vector<8x256xf32>
    %229 = arith.mulf %198, %228 : vector<8x256xf32>
    %230 = arith.addf %194, %229 : vector<8x256xf32>
    %c0_34 = arith.constant 0 : index
    %c129 = arith.constant 129 : index
    %231 = vector.load %arg7[%c0_34, %c129] : memref<8x512xf32, #tpu.memory_space<vmem>>, vector<8x256xf32>
    %232 = vector.extract_strided_slice %37 {offsets = [0, 5], sizes = [8, 1], strides = [1, 1]} : vector<8x9xf32> to vector<8x1xf32>
    %233 = vector.shape_cast %232 : vector<8x1xf32> to vector<8x1xf32>
    %234 = vector.broadcast %233 : vector<8x1xf32> to vector<8x256xf32>
    %235 = vector.extract_strided_slice %231 {offsets = [0, 0], sizes = [1, 256], strides = [1, 1]} : vector<8x256xf32> to vector<1x256xf32>
    %236 = vector.broadcast %235 : vector<1x256xf32> to vector<8x256xf32>
    %237 = arith.mulf %234, %236 : vector<8x256xf32>
    %238 = arith.addf %202, %237 : vector<8x256xf32>
    %239 = vector.extract_strided_slice %231 {offsets = [1, 0], sizes = [1, 256], strides = [1, 1]} : vector<8x256xf32> to vector<1x256xf32>
    %240 = vector.broadcast %239 : vector<1x256xf32> to vector<8x256xf32>
    %241 = arith.mulf %234, %240 : vector<8x256xf32>
    %242 = arith.addf %206, %241 : vector<8x256xf32>
    %243 = vector.extract_strided_slice %231 {offsets = [2, 0], sizes = [1, 256], strides = [1, 1]} : vector<8x256xf32> to vector<1x256xf32>
    %244 = vector.broadcast %243 : vector<1x256xf32> to vector<8x256xf32>
    %245 = arith.mulf %234, %244 : vector<8x256xf32>
    %246 = arith.addf %210, %245 : vector<8x256xf32>
    %247 = vector.extract_strided_slice %231 {offsets = [3, 0], sizes = [1, 256], strides = [1, 1]} : vector<8x256xf32> to vector<1x256xf32>
    %248 = vector.broadcast %247 : vector<1x256xf32> to vector<8x256xf32>
    %249 = arith.mulf %234, %248 : vector<8x256xf32>
    %250 = arith.addf %214, %249 : vector<8x256xf32>
    %251 = vector.extract_strided_slice %231 {offsets = [4, 0], sizes = [1, 256], strides = [1, 1]} : vector<8x256xf32> to vector<1x256xf32>
    %252 = vector.broadcast %251 : vector<1x256xf32> to vector<8x256xf32>
    %253 = arith.mulf %234, %252 : vector<8x256xf32>
    %254 = arith.addf %218, %253 : vector<8x256xf32>
    %255 = vector.extract_strided_slice %231 {offsets = [5, 0], sizes = [1, 256], strides = [1, 1]} : vector<8x256xf32> to vector<1x256xf32>
    %256 = vector.broadcast %255 : vector<1x256xf32> to vector<8x256xf32>
    %257 = arith.mulf %234, %256 : vector<8x256xf32>
    %258 = arith.addf %222, %257 : vector<8x256xf32>
    %259 = vector.extract_strided_slice %231 {offsets = [6, 0], sizes = [1, 256], strides = [1, 1]} : vector<8x256xf32> to vector<1x256xf32>
    %260 = vector.broadcast %259 : vector<1x256xf32> to vector<8x256xf32>
    %261 = arith.mulf %234, %260 : vector<8x256xf32>
    %262 = arith.addf %226, %261 : vector<8x256xf32>
    %263 = vector.extract_strided_slice %231 {offsets = [7, 0], sizes = [1, 256], strides = [1, 1]} : vector<8x256xf32> to vector<1x256xf32>
    %264 = vector.broadcast %263 : vector<1x256xf32> to vector<8x256xf32>
    %265 = arith.mulf %234, %264 : vector<8x256xf32>
    %266 = arith.addf %230, %265 : vector<8x256xf32>
    %c0_35 = arith.constant 0 : index
    %c130 = arith.constant 130 : index
    %267 = vector.load %arg7[%c0_35, %c130] : memref<8x512xf32, #tpu.memory_space<vmem>>, vector<8x256xf32>
    %268 = vector.extract_strided_slice %37 {offsets = [0, 6], sizes = [8, 1], strides = [1, 1]} : vector<8x9xf32> to vector<8x1xf32>
    %269 = vector.shape_cast %268 : vector<8x1xf32> to vector<8x1xf32>
    %270 = vector.broadcast %269 : vector<8x1xf32> to vector<8x256xf32>
    %271 = vector.extract_strided_slice %267 {offsets = [0, 0], sizes = [1, 256], strides = [1, 1]} : vector<8x256xf32> to vector<1x256xf32>
    %272 = vector.broadcast %271 : vector<1x256xf32> to vector<8x256xf32>
    %273 = arith.mulf %270, %272 : vector<8x256xf32>
    %274 = arith.addf %238, %273 : vector<8x256xf32>
    %275 = vector.extract_strided_slice %267 {offsets = [1, 0], sizes = [1, 256], strides = [1, 1]} : vector<8x256xf32> to vector<1x256xf32>
    %276 = vector.broadcast %275 : vector<1x256xf32> to vector<8x256xf32>
    %277 = arith.mulf %270, %276 : vector<8x256xf32>
    %278 = arith.addf %242, %277 : vector<8x256xf32>
    %279 = vector.extract_strided_slice %267 {offsets = [2, 0], sizes = [1, 256], strides = [1, 1]} : vector<8x256xf32> to vector<1x256xf32>
    %280 = vector.broadcast %279 : vector<1x256xf32> to vector<8x256xf32>
    %281 = arith.mulf %270, %280 : vector<8x256xf32>
    %282 = arith.addf %246, %281 : vector<8x256xf32>
    %283 = vector.extract_strided_slice %267 {offsets = [3, 0], sizes = [1, 256], strides = [1, 1]} : vector<8x256xf32> to vector<1x256xf32>
    %284 = vector.broadcast %283 : vector<1x256xf32> to vector<8x256xf32>
    %285 = arith.mulf %270, %284 : vector<8x256xf32>
    %286 = arith.addf %250, %285 : vector<8x256xf32>
    %287 = vector.extract_strided_slice %267 {offsets = [4, 0], sizes = [1, 256], strides = [1, 1]} : vector<8x256xf32> to vector<1x256xf32>
    %288 = vector.broadcast %287 : vector<1x256xf32> to vector<8x256xf32>
    %289 = arith.mulf %270, %288 : vector<8x256xf32>
    %290 = arith.addf %254, %289 : vector<8x256xf32>
    %291 = vector.extract_strided_slice %267 {offsets = [5, 0], sizes = [1, 256], strides = [1, 1]} : vector<8x256xf32> to vector<1x256xf32>
    %292 = vector.broadcast %291 : vector<1x256xf32> to vector<8x256xf32>
    %293 = arith.mulf %270, %292 : vector<8x256xf32>
    %294 = arith.addf %258, %293 : vector<8x256xf32>
    %295 = vector.extract_strided_slice %267 {offsets = [6, 0], sizes = [1, 256], strides = [1, 1]} : vector<8x256xf32> to vector<1x256xf32>
    %296 = vector.broadcast %295 : vector<1x256xf32> to vector<8x256xf32>
    %297 = arith.mulf %270, %296 : vector<8x256xf32>
    %298 = arith.addf %262, %297 : vector<8x256xf32>
    %299 = vector.extract_strided_slice %267 {offsets = [7, 0], sizes = [1, 256], strides = [1, 1]} : vector<8x256xf32> to vector<1x256xf32>
    %300 = vector.broadcast %299 : vector<1x256xf32> to vector<8x256xf32>
    %301 = arith.mulf %270, %300 : vector<8x256xf32>
    %302 = arith.addf %266, %301 : vector<8x256xf32>
    %c0_36 = arith.constant 0 : index
    %c131 = arith.constant 131 : index
    %303 = vector.load %arg7[%c0_36, %c131] : memref<8x512xf32, #tpu.memory_space<vmem>>, vector<8x256xf32>
    %304 = vector.extract_strided_slice %37 {offsets = [0, 7], sizes = [8, 1], strides = [1, 1]} : vector<8x9xf32> to vector<8x1xf32>
    %305 = vector.shape_cast %304 : vector<8x1xf32> to vector<8x1xf32>
    %306 = vector.broadcast %305 : vector<8x1xf32> to vector<8x256xf32>
    %307 = vector.extract_strided_slice %303 {offsets = [0, 0], sizes = [1, 256], strides = [1, 1]} : vector<8x256xf32> to vector<1x256xf32>
    %308 = vector.broadcast %307 : vector<1x256xf32> to vector<8x256xf32>
    %309 = arith.mulf %306, %308 : vector<8x256xf32>
    %310 = arith.addf %274, %309 : vector<8x256xf32>
    %311 = vector.extract_strided_slice %303 {offsets = [1, 0], sizes = [1, 256], strides = [1, 1]} : vector<8x256xf32> to vector<1x256xf32>
    %312 = vector.broadcast %311 : vector<1x256xf32> to vector<8x256xf32>
    %313 = arith.mulf %306, %312 : vector<8x256xf32>
    %314 = arith.addf %278, %313 : vector<8x256xf32>
    %315 = vector.extract_strided_slice %303 {offsets = [2, 0], sizes = [1, 256], strides = [1, 1]} : vector<8x256xf32> to vector<1x256xf32>
    %316 = vector.broadcast %315 : vector<1x256xf32> to vector<8x256xf32>
    %317 = arith.mulf %306, %316 : vector<8x256xf32>
    %318 = arith.addf %282, %317 : vector<8x256xf32>
    %319 = vector.extract_strided_slice %303 {offsets = [3, 0], sizes = [1, 256], strides = [1, 1]} : vector<8x256xf32> to vector<1x256xf32>
    %320 = vector.broadcast %319 : vector<1x256xf32> to vector<8x256xf32>
    %321 = arith.mulf %306, %320 : vector<8x256xf32>
    %322 = arith.addf %286, %321 : vector<8x256xf32>
    %323 = vector.extract_strided_slice %303 {offsets = [4, 0], sizes = [1, 256], strides = [1, 1]} : vector<8x256xf32> to vector<1x256xf32>
    %324 = vector.broadcast %323 : vector<1x256xf32> to vector<8x256xf32>
    %325 = arith.mulf %306, %324 : vector<8x256xf32>
    %326 = arith.addf %290, %325 : vector<8x256xf32>
    %327 = vector.extract_strided_slice %303 {offsets = [5, 0], sizes = [1, 256], strides = [1, 1]} : vector<8x256xf32> to vector<1x256xf32>
    %328 = vector.broadcast %327 : vector<1x256xf32> to vector<8x256xf32>
    %329 = arith.mulf %306, %328 : vector<8x256xf32>
    %330 = arith.addf %294, %329 : vector<8x256xf32>
    %331 = vector.extract_strided_slice %303 {offsets = [6, 0], sizes = [1, 256], strides = [1, 1]} : vector<8x256xf32> to vector<1x256xf32>
    %332 = vector.broadcast %331 : vector<1x256xf32> to vector<8x256xf32>
    %333 = arith.mulf %306, %332 : vector<8x256xf32>
    %334 = arith.addf %298, %333 : vector<8x256xf32>
    %335 = vector.extract_strided_slice %303 {offsets = [7, 0], sizes = [1, 256], strides = [1, 1]} : vector<8x256xf32> to vector<1x256xf32>
    %336 = vector.broadcast %335 : vector<1x256xf32> to vector<8x256xf32>
    %337 = arith.mulf %306, %336 : vector<8x256xf32>
    %338 = arith.addf %302, %337 : vector<8x256xf32>
    %c0_37 = arith.constant 0 : index
    %c132 = arith.constant 132 : index
    %339 = vector.load %arg7[%c0_37, %c132] : memref<8x512xf32, #tpu.memory_space<vmem>>, vector<8x256xf32>
    %340 = vector.extract_strided_slice %37 {offsets = [0, 8], sizes = [8, 1], strides = [1, 1]} : vector<8x9xf32> to vector<8x1xf32>
    %341 = vector.shape_cast %340 : vector<8x1xf32> to vector<8x1xf32>
    %342 = vector.broadcast %341 : vector<8x1xf32> to vector<8x256xf32>
    %343 = vector.extract_strided_slice %339 {offsets = [0, 0], sizes = [1, 256], strides = [1, 1]} : vector<8x256xf32> to vector<1x256xf32>
    %344 = vector.broadcast %343 : vector<1x256xf32> to vector<8x256xf32>
    %345 = arith.mulf %342, %344 : vector<8x256xf32>
    %346 = arith.addf %310, %345 : vector<8x256xf32>
    %347 = vector.extract_strided_slice %339 {offsets = [1, 0], sizes = [1, 256], strides = [1, 1]} : vector<8x256xf32> to vector<1x256xf32>
    %348 = vector.broadcast %347 : vector<1x256xf32> to vector<8x256xf32>
    %349 = arith.mulf %342, %348 : vector<8x256xf32>
    %350 = arith.addf %314, %349 : vector<8x256xf32>
    %351 = vector.extract_strided_slice %339 {offsets = [2, 0], sizes = [1, 256], strides = [1, 1]} : vector<8x256xf32> to vector<1x256xf32>
    %352 = vector.broadcast %351 : vector<1x256xf32> to vector<8x256xf32>
    %353 = arith.mulf %342, %352 : vector<8x256xf32>
    %354 = arith.addf %318, %353 : vector<8x256xf32>
    %355 = vector.extract_strided_slice %339 {offsets = [3, 0], sizes = [1, 256], strides = [1, 1]} : vector<8x256xf32> to vector<1x256xf32>
    %356 = vector.broadcast %355 : vector<1x256xf32> to vector<8x256xf32>
    %357 = arith.mulf %342, %356 : vector<8x256xf32>
    %358 = arith.addf %322, %357 : vector<8x256xf32>
    %359 = vector.extract_strided_slice %339 {offsets = [4, 0], sizes = [1, 256], strides = [1, 1]} : vector<8x256xf32> to vector<1x256xf32>
    %360 = vector.broadcast %359 : vector<1x256xf32> to vector<8x256xf32>
    %361 = arith.mulf %342, %360 : vector<8x256xf32>
    %362 = arith.addf %326, %361 : vector<8x256xf32>
    %363 = vector.extract_strided_slice %339 {offsets = [5, 0], sizes = [1, 256], strides = [1, 1]} : vector<8x256xf32> to vector<1x256xf32>
    %364 = vector.broadcast %363 : vector<1x256xf32> to vector<8x256xf32>
    %365 = arith.mulf %342, %364 : vector<8x256xf32>
    %366 = arith.addf %330, %365 : vector<8x256xf32>
    %367 = vector.extract_strided_slice %339 {offsets = [6, 0], sizes = [1, 256], strides = [1, 1]} : vector<8x256xf32> to vector<1x256xf32>
    %368 = vector.broadcast %367 : vector<1x256xf32> to vector<8x256xf32>
    %369 = arith.mulf %342, %368 : vector<8x256xf32>
    %370 = arith.addf %334, %369 : vector<8x256xf32>
    %371 = vector.extract_strided_slice %339 {offsets = [7, 0], sizes = [1, 256], strides = [1, 1]} : vector<8x256xf32> to vector<1x256xf32>
    %372 = vector.broadcast %371 : vector<1x256xf32> to vector<8x256xf32>
    %373 = arith.mulf %342, %372 : vector<8x256xf32>
    %374 = arith.addf %338, %373 : vector<8x256xf32>
    %c0_38 = arith.constant 0 : index
    %c0_39 = arith.constant 0 : index
    %c0_40 = arith.constant 0 : index
    %375 = vector.load %arg6[%c0_38, %c0_39, %c0_40] : memref<8x8x256xf32, #tpu.memory_space<vmem>>, vector<1x8x256xf32>
    %376 = vector.shape_cast %375 : vector<1x8x256xf32> to vector<8x256xf32>
    %377 = vector.shape_cast %346 : vector<8x256xf32> to vector<1x8x256xf32>
    tpu.vector_store %arg6[%c0_38, %c0_39, %c0_40], %377 {strides = array<i32>} : memref<8x8x256xf32, #tpu.memory_space<vmem>>, vector<1x8x256xf32>,
    %c1 = arith.constant 1 : index
    %c0_41 = arith.constant 0 : index
    %c0_42 = arith.constant 0 : index
    %378 = vector.load %arg6[%c1, %c0_41, %c0_42] : memref<8x8x256xf32, #tpu.memory_space<vmem>>, vector<1x8x256xf32>
    %379 = vector.shape_cast %378 : vector<1x8x256xf32> to vector<8x256xf32>
    %380 = vector.shape_cast %350 : vector<8x256xf32> to vector<1x8x256xf32>
    tpu.vector_store %arg6[%c1, %c0_41, %c0_42], %380 {strides = array<i32>} : memref<8x8x256xf32, #tpu.memory_space<vmem>>, vector<1x8x256xf32>,
    %c2 = arith.constant 2 : index
    %c0_43 = arith.constant 0 : index
    %c0_44 = arith.constant 0 : index
    %381 = vector.load %arg6[%c2, %c0_43, %c0_44] : memref<8x8x256xf32, #tpu.memory_space<vmem>>, vector<1x8x256xf32>
    %382 = vector.shape_cast %381 : vector<1x8x256xf32> to vector<8x256xf32>
    %383 = vector.shape_cast %354 : vector<8x256xf32> to vector<1x8x256xf32>
    tpu.vector_store %arg6[%c2, %c0_43, %c0_44], %383 {strides = array<i32>} : memref<8x8x256xf32, #tpu.memory_space<vmem>>, vector<1x8x256xf32>,
    %c3 = arith.constant 3 : index
    %c0_45 = arith.constant 0 : index
    %c0_46 = arith.constant 0 : index
    %384 = vector.load %arg6[%c3, %c0_45, %c0_46] : memref<8x8x256xf32, #tpu.memory_space<vmem>>, vector<1x8x256xf32>
    %385 = vector.shape_cast %384 : vector<1x8x256xf32> to vector<8x256xf32>
    %386 = vector.shape_cast %358 : vector<8x256xf32> to vector<1x8x256xf32>
    tpu.vector_store %arg6[%c3, %c0_45, %c0_46], %386 {strides = array<i32>} : memref<8x8x256xf32, #tpu.memory_space<vmem>>, vector<1x8x256xf32>,
    %c4 = arith.constant 4 : index
    %c0_47 = arith.constant 0 : index
    %c0_48 = arith.constant 0 : index
    %387 = vector.load %arg6[%c4, %c0_47, %c0_48] : memref<8x8x256xf32, #tpu.memory_space<vmem>>, vector<1x8x256xf32>
    %388 = vector.shape_cast %387 : vector<1x8x256xf32> to vector<8x256xf32>
    %389 = vector.shape_cast %362 : vector<8x256xf32> to vector<1x8x256xf32>
    tpu.vector_store %arg6[%c4, %c0_47, %c0_48], %389 {strides = array<i32>} : memref<8x8x256xf32, #tpu.memory_space<vmem>>, vector<1x8x256xf32>,
    %c5 = arith.constant 5 : index
    %c0_49 = arith.constant 0 : index
    %c0_50 = arith.constant 0 : index
    %390 = vector.load %arg6[%c5, %c0_49, %c0_50] : memref<8x8x256xf32, #tpu.memory_space<vmem>>, vector<1x8x256xf32>
    %391 = vector.shape_cast %390 : vector<1x8x256xf32> to vector<8x256xf32>
    %392 = vector.shape_cast %366 : vector<8x256xf32> to vector<1x8x256xf32>
    tpu.vector_store %arg6[%c5, %c0_49, %c0_50], %392 {strides = array<i32>} : memref<8x8x256xf32, #tpu.memory_space<vmem>>, vector<1x8x256xf32>,
    %c6 = arith.constant 6 : index
    %c0_51 = arith.constant 0 : index
    %c0_52 = arith.constant 0 : index
    %393 = vector.load %arg6[%c6, %c0_51, %c0_52] : memref<8x8x256xf32, #tpu.memory_space<vmem>>, vector<1x8x256xf32>
    %394 = vector.shape_cast %393 : vector<1x8x256xf32> to vector<8x256xf32>
    %395 = vector.shape_cast %370 : vector<8x256xf32> to vector<1x8x256xf32>
    tpu.vector_store %arg6[%c6, %c0_51, %c0_52], %395 {strides = array<i32>} : memref<8x8x256xf32, #tpu.memory_space<vmem>>, vector<1x8x256xf32>,
    %c7 = arith.constant 7 : index
    %c0_53 = arith.constant 0 : index
    %c0_54 = arith.constant 0 : index
    %396 = vector.load %arg6[%c7, %c0_53, %c0_54] : memref<8x8x256xf32, #tpu.memory_space<vmem>>, vector<1x8x256xf32>
    %397 = vector.shape_cast %396 : vector<1x8x256xf32> to vector<8x256xf32>
    %398 = vector.shape_cast %374 : vector<8x256xf32> to vector<1x8x256xf32>
    tpu.vector_store %arg6[%c7, %c0_53, %c0_54], %398 {strides = array<i32>} : memref<8x8x256xf32, #tpu.memory_space<vmem>>, vector<1x8x256xf32>,
    return
  }
  func.func @transform_0(%arg0: i32) -> (i32, i32) {
    %c0_i32 = arith.constant 0 : i32
    %c0_i32_0 = arith.constant 0 : i32
    %c0_i32_1 = arith.constant 0 : i32
    return %c0_i32, %c0_i32_0 : i32, i32
  }
  func.func @transform_1(%arg0: i32) -> (i32, i32) {
    %c0_i32 = arith.constant 0 : i32
    %c0_i32_0 = arith.constant 0 : i32
    %c0_i32_1 = arith.constant 0 : i32
    return %c0_i32, %c0_i32_0 : i32, i32
  }
  func.func @transform_2(%arg0: i32) -> (i32, i32) {
    %c0_i32 = arith.constant 0 : i32
    %c0_i32_0 = arith.constant 0 : i32
    %c0_i32_1 = arith.constant 0 : i32
    return %c0_i32, %c0_i32_0 : i32, i32
  }
  func.func @transform_3(%arg0: i32) -> (i32, i32) {
    %c0_i32 = arith.constant 0 : i32
    %c0_i32_0 = arith.constant 0 : i32
    %c0_i32_1 = arith.constant 0 : i32
    return %c0_i32, %c0_i32_0 : i32, i32
  }
  func.func @transform_4(%arg0: i32) -> (i32, i32) {
    %c0_i32 = arith.constant 0 : i32
    %c0_i32_0 = arith.constant 0 : i32
    return %arg0, %c0_i32 : i32, i32
  }
  func.func @transform_5(%arg0: i32) -> (i32, i32, i32) {
    %c0_i32 = arith.constant 0 : i32
    %c0_i32_0 = arith.constant 0 : i32
    %c0_i32_1 = arith.constant 0 : i32
    return %arg0, %c0_i32, %c0_i32_0 : i32, i32, i32
  }
}

</mosaic_0001>

<llo_original>
// kernel: tpu_custom_call.1
$region0: #{tpu_custom_call.1}
  #allocation0 [shape = 'u32[]', space=smem, size = 0x4, offset = 0x4, fixed_abs, tag = 'smem constant byte address 0x4 - core index']
  #allocation1 [shape = 'u32[144,128]{1,0:T(1,128)}', space=vmem, size = 0x12000, scoped, tag = 'internal scratch']
  #allocation2 [shape = 'f32[8,512]{1,0:T(8,128)}', space=vmem, size = 0x4000, scoped, tag = 'scratch operand']
  %s0 = inlined_call_operand.vmem [shape: f32[8,1], index: 0, kind: input, shape index: {}]
  %s1 = inlined_call_operand.vmem [shape: f32[8,1], index: 1, kind: input, shape index: {}]
  %s2 = inlined_call_operand.vmem [shape: f32[1,9], index: 2, kind: input, shape index: {}]
  %s3 = inlined_call_operand.hbm [shape: f32[1,9], index: 3, kind: input, shape index: {}]
  %s4 = inlined_call_operand.vmem [shape: f32[16,256], index: 4, kind: input, shape index: {}]
  %s5 = inlined_call_operand.hbm [shape: f32[16,8,256], index: 5, kind: output, shape index: {}]
  %s6 = sld [smem:[#allocation0]]
  $region57: #{tpu_custom_call.1} parent=0
    _
  %s8 = ssub.s32 1, %s6
  %s9 = scalar_select 0, %s8, %s6
  $region1: #{tpu_custom_call.1} parent=0
    #allocation3 [shape = 'u8[512]{0}', space=vmem, size = 0x400, scoped, tag = 'input window, operand 3, single buffered']
    #allocation4 [shape = 's32[2]{0}', space=sflag, size = 0x8, scoped, tag = 'scoped memory for tpu_custom_call.1']
    #allocation5 [shape = 's32[2]{0}', space=sflag, size = 0x8, scoped, tag = 'scoped memory for tpu_custom_call.1']
    #allocation6 [shape = 'u8[131072]{0}', space=vmem, size = 0x20000, scoped, tag = 'output window, operand 0']
    %10 = vsyncpa [#allocation4], 0
    %11 = vsyncpa [#allocation5], 0
    %s12 = scalar_lea.sflag [#allocation5], 1
    %13 = vsyncpa %s12, 0
    loop: start=0, step=1, limit=4
    $region2: #{tpu_custom_call.1} parent=1 // loop_pre_header
      _
    $region3: #{tpu_custom_call.1} parent=1 // loop_header
      %s15 = sphi 0, %s19
      %p16 = scmp.ge.s32.totalorder %s15, 4
      %s23 = sphi 0, %s23
      %s25 = sphi 0, %s23
      %s26 = sphi 0, %s25
      %s40 = sphi 0, %s26
      %s44 = sphi 0, %s44
      %s46 = sphi 0, %s44
      %s47 = sphi 0, %s46
      %s61 = sphi 0, %s47
      %s65 = sphi 0, %s65
      %s67 = sphi 0, %s65
      %s68 = sphi 0, %s67
      %s82 = sphi 0, %s68
      %s86 = sphi 0, %s86
      %s88 = sphi 0, %s86
      %s89 = sphi 0, %s88
      %s103 = sphi 0, %s89
      %s109 = sphi 0, %s111
      %s112 = sphi 0, %s109
      %s113 = sphi 0, %s112
      %s129 = sphi 0, %s113
      %s135 = sphi 0, %s137
      %s138 = sphi 0, %s135
      %s139 = sphi 0, %s138
      %s155 = sphi 0, %s139
    $region4: #{tpu_custom_call.1} parent=1 // loop_header_branch
      %18 = sbr.rel (%p16) target = $region8
    $region5: #{tpu_custom_call.1} parent=1 // loop_body
      %s20 = ssub.s32 %s15, 1
      %s21 = ssub.s32 %s15, 2
      %s22 = sadd.s32 %s15, 1
      %s24 = sadd.s32 %s23, 1
      %p27 = scmp.eq.s32.totalorder %s15, 1
      %p28 = scmp.ne.s32.totalorder %s23, %s25
      %p29 = scmp.eq.s32.totalorder %s15, 0
      %p30 = por %p28, %p29
      %p31 = scmp.ne.s32.totalorder %s23, %s25
      %p32 = scmp.eq.s32.totalorder %s20, 1
      %p33 = por %p31, %p32
      %p34 = scmp.ne.s32.totalorder %s25, %s26
      %p35 = scmp.eq.s32.totalorder %s20, 0
      %p36 = por %p34, %p35
      %p37 = scmp.ne.s32.totalorder %s25, %s26
      %p38 = scmp.eq.s32.totalorder %s21, 1
      %p39 = por %p37, %p38
      %p41 = scmp.ne.s32.totalorder %s26, %s40
      %p42 = scmp.eq.s32.totalorder %s21, 0
      %p43 = por %p41, %p42
      %s45 = sadd.s32 %s44, 1
      %p48 = scmp.eq.s32.totalorder %s15, 1
      %p49 = scmp.ne.s32.totalorder %s44, %s46
      %p50 = scmp.eq.s32.totalorder %s15, 0
      %p51 = por %p49, %p50
      %p52 = scmp.ne.s32.totalorder %s44, %s46
      %p53 = scmp.eq.s32.totalorder %s20, 1
      %p54 = por %p52, %p53
      %p55 = scmp.ne.s32.totalorder %s46, %s47
      %p56 = scmp.eq.s32.totalorder %s20, 0
      %p57 = por %p55, %p56
      %p58 = scmp.ne.s32.totalorder %s46, %s47
      %p59 = scmp.eq.s32.totalorder %s21, 1
      %p60 = por %p58, %p59
      %p62 = scmp.ne.s32.totalorder %s47, %s61
      %p63 = scmp.eq.s32.totalorder %s21, 0
      %p64 = por %p62, %p63
      %s66 = sadd.s32 %s65, 1
      %p69 = scmp.eq.s32.totalorder %s15, 1
      %p70 = scmp.ne.s32.totalorder %s65, %s67
      %p71 = scmp.eq.s32.totalorder %s15, 0
      %p72 = por %p70, %p71
      %p73 = scmp.ne.s32.totalorder %s65, %s67
      %p74 = scmp.eq.s32.totalorder %s20, 1
      %p75 = por %p73, %p74
      %p76 = scmp.ne.s32.totalorder %s67, %s68
      %p77 = scmp.eq.s32.totalorder %s20, 0
      %p78 = por %p76, %p77
      %p79 = scmp.ne.s32.totalorder %s67, %s68
      %p80 = scmp.eq.s32.totalorder %s21, 1
      %p81 = por %p79, %p80
      %p83 = scmp.ne.s32.totalorder %s68, %s82
      %p84 = scmp.eq.s32.totalorder %s21, 0
      %p85 = por %p83, %p84
      %s87 = sadd.s32 %s86, 1
      %p90 = scmp.eq.s32.totalorder %s15, 1
      %p91 = scmp.ne.s32.totalorder %s86, %s88
      %p92 = scmp.eq.s32.totalorder %s15, 0
      %p93 = por %p91, %p92
      %p94 = scmp.ne.s32.totalorder %s86, %s88
      %p95 = scmp.eq.s32.totalorder %s20, 1
      %p96 = por %p94, %p95
      %p97 = scmp.ne.s32.totalorder %s88, %s89
      %p98 = scmp.eq.s32.totalorder %s20, 0
      %p99 = por %p97, %p98
      %p100 = scmp.ne.s32.totalorder %s88, %s89
      %p101 = scmp.eq.s32.totalorder %s21, 1
      %p102 = por %p100, %p101
      %p104 = scmp.ne.s32.totalorder %s89, %s103
      %p105 = scmp.eq.s32.totalorder %s21, 0
      %p106 = por %p104, %p105
      %s107 = ssub.s32 %s15, %s22
      %p108 = scmp.eq.s32.totalorder %s107, 0
      %s110 = sadd.s32 %s109, 1
      %s111 = scalar_select %p108, %s109, %s110
      %p114 = pneg %p108
      %p115 = scmp.eq.s32.totalorder %s15, 1
      %p116 = por %p114, %p115
      %p117 = scmp.ne.s32.totalorder %s109, %s112
      %p118 = scmp.eq.s32.totalorder %s15, 0
      %p119 = por %p117, %p118
      %p120 = scmp.ne.s32.totalorder %s109, %s112
      %p121 = scmp.eq.s32.totalorder %s20, 1
      %p122 = por %p120, %p121
      %p123 = scmp.ne.s32.totalorder %s112, %s113
      %p124 = scmp.eq.s32.totalorder %s20, 0
      %p125 = por %p123, %p124
      %p126 = scmp.ne.s32.totalorder %s112, %s113
      %p127 = scmp.eq.s32.totalorder %s21, 1
      %p128 = por %p126, %p127
      %p130 = scmp.ne.s32.totalorder %s113, %s129
      %p131 = scmp.eq.s32.totalorder %s21, 0
      %p132 = por %p130, %p131
      %s133 = ssub.s32 %s15, %s22
      %p134 = scmp.eq.s32.totalorder %s133, 0
      %s136 = sadd.s32 %s135, 1
      %s137 = scalar_select %p134, %s135, %s136
      %p140 = pneg %p134
      %p141 = scmp.eq.s32.totalorder %s15, 1
      %p142 = por %p140, %p141
      %p143 = scmp.ne.s32.totalorder %s135, %s138
      %p144 = scmp.eq.s32.totalorder %s15, 0
      %p145 = por %p143, %p144
      %p146 = scmp.ne.s32.totalorder %s135, %s138
      %p147 = scmp.eq.s32.totalorder %s20, 1
      %p148 = por %p146, %p147
      %p149 = scmp.ne.s32.totalorder %s138, %s139
      %p150 = scmp.eq.s32.totalorder %s20, 0
      %p151 = por %p149, %p150
      %p152 = scmp.ne.s32.totalorder %s138, %s139
      %p153 = scmp.eq.s32.totalorder %s21, 1
      %p154 = por %p152, %p153
      %p156 = scmp.ne.s32.totalorder %s139, %s155
      %p157 = scmp.eq.s32.totalorder %s21, 0
      %p158 = por %p156, %p157
      %p159 = scmp.le.s32.totalorder 1, %s15
      %p160 = scmp.lt.s32.totalorder %s15, 3
      %p161 = pnand %p159, %p160
      %p162 = pneg %p161
      // Predicated region
      $region9: #{tpu_custom_call.1} parent=5 // pred_check
        _
      $region10: #{tpu_custom_call.1} parent=5 // pred_check_branch
        %164 = sbr.rel (%p161) target = $region12
      $region11: #{tpu_custom_call.1} parent=5 // pred_region
        %s165 = ssub.s32 %s15, 1
        // Predicated region
        $region13: #{tpu_custom_call.1} parent=11 // pred_check
          %p166 = pneg %p36
        $region14: #{tpu_custom_call.1} parent=11 // pred_check_branch
          %168 = sbr.rel (%p166) target = $region16
        $region15: #{tpu_custom_call.1} parent=11 // pred_region
          _
        $region16: #{tpu_custom_call.1} parent=11 // pred_fallthru
          _
        // Predicated region
        $region17: #{tpu_custom_call.1} parent=11 // pred_check
          %p169 = pneg %p57
        $region18: #{tpu_custom_call.1} parent=11 // pred_check_branch
          %171 = sbr.rel (%p169) target = $region20
        $region19: #{tpu_custom_call.1} parent=11 // pred_region
          _
        $region20: #{tpu_custom_call.1} parent=11 // pred_fallthru
          _
        // Predicated region
        $region21: #{tpu_custom_call.1} parent=11 // pred_check
          %p172 = pneg %p78
        $region22: #{tpu_custom_call.1} parent=11 // pred_check_branch
          %174 = sbr.rel (%p172) target = $region24
        $region23: #{tpu_custom_call.1} parent=11 // pred_region
          _
        $region24: #{tpu_custom_call.1} parent=11 // pred_fallthru
          _
        // Predicated region
        $region25: #{tpu_custom_call.1} parent=11 // pred_check
          %p175 = pneg %p99
        $region26: #{tpu_custom_call.1} parent=11 // pred_check_branch
          %177 = sbr.rel (%p175) target = $region28
        $region27: #{tpu_custom_call.1} parent=11 // pred_region
          %s179 = ssub.s32 16, 16
          %180 = vsyncadd [#allocation4], %s179
          %s182 = sshll.u32 [#allocation3], 4
          %s183 = int_to_ptr.vmem [resolvable:$true] %s182
          %185 = dma.hbm_to_vmem [thread:$0]  %s3, 16, %s183, [#allocation4]
        $region28: #{tpu_custom_call.1} parent=11 // pred_fallthru
          _
      $region12: #{tpu_custom_call.1} parent=5 // pred_fallthru
        _
      %p186 = scmp.lt.s32.totalorder %s15, 2
      // Predicated region
      $region29: #{tpu_custom_call.1} parent=5 // pred_check
        %p187 = pneg %p186
      $region30: #{tpu_custom_call.1} parent=5 // pred_check_branch
        %189 = sbr.rel (%p187) target = $region32
      $region31: #{tpu_custom_call.1} parent=5 // pred_region
        // Predicated region
        $region33: #{tpu_custom_call.1} parent=31 // pred_check
          %p190 = pneg %p119
        $region34: #{tpu_custom_call.1} parent=31 // pred_check_branch
          %192 = sbr.rel (%p190) target = $region36
        $region35: #{tpu_custom_call.1} parent=31 // pred_region
          %p193 = scmp.lt.s32.totalorder %s15, 1
          %s194 = scalar_select %p193, %s15, 1
          %s195 = smul.addr %s194, 2
          %s196 = smul.addr %s195, 8
          %s197 = scalar_lea.vmem %s4, %s196
        $region36: #{tpu_custom_call.1} parent=31 // pred_fallthru
          _
      $region32: #{tpu_custom_call.1} parent=5 // pred_fallthru
        _
      %p198 = scmp.le.s32.totalorder 1, %s15
      %p199 = scmp.lt.s32.totalorder %s15, 3
      %p200 = pnand %p198, %p199
      %p201 = pneg %p200
      // Predicated region
      $region37: #{tpu_custom_call.1} parent=5 // pred_check
        _
      $region38: #{tpu_custom_call.1} parent=5 // pred_check_branch
        %203 = sbr.rel (%p200) target = $region40
      $region39: #{tpu_custom_call.1} parent=5 // pred_region
        %s204 = ssub.s32 %s15, 1
        // Predicated region
        $region41: #{tpu_custom_call.1} parent=39 // pred_check
          %p205 = pneg %p99
        $region42: #{tpu_custom_call.1} parent=39 // pred_check_branch
          %207 = sbr.rel (%p205) target = $region44
        $region43: #{tpu_custom_call.1} parent=39 // pred_region
          %208 = dma.done [#allocation4], 16
        $region44: #{tpu_custom_call.1} parent=39 // pred_fallthru
          _
        %p209 = pneg %p36
        %p210 = pneg %p33
        %p211 = pneg %p57
        %p212 = pneg %p54
        %p213 = pneg %p78
        %p214 = pneg %p75
        %p215 = pneg %p99
        %p216 = pneg %p96
        %p217 = scmp.lt.s32.totalorder %s20, 1
        %s218 = scalar_select %p217, %s20, 1
        %s219 = smul.addr %s218, 2
        %s220 = smul.addr %s219, 8
        %s221 = scalar_lea.vmem %s4, %s220
        %p222 = pneg %p125
        %p223 = pneg %p122
        %p224 = pneg %p151
        %p225 = pneg %p148
        %s226 = sand.u32 %s138, 1
        %s227 = scalar_lea.sflag [#allocation5], %s226
        %s228 = sand.u32 %s138, 1
        %s229 = smul.addr %s228, 128
        %s230 = scalar_lea.vmem [#allocation6], %s229
        %p231 = scmp.lt.s32.totalorder %s20, 1
        %s232 = scalar_select %p231, %s20, 1
        %s233 = smul.addr %s232, 2
        %s234 = smul.addr %s233, 8
        %s235 = scalar_lea.vmem %s4, %s234
        %s236 = smul.u32 8, %s20
        %v237 = vld [vmem:[%s0] sm:$0xff]
        %v238 = vand.u32 2147483647, %v237
        %v239 = vadd.f32 %v238, 50.0
        %v240 = vadd.f32 %v239, 50.0
        %v241 = vld [vmem:[%s1] sm:$0xff]
        %v242 = vand.u32 2147483647, %v241
        %v243 = vadd.f32 %v240, %v242
        %v244 = vmax.f32 %v243, 50.0
        %v245 = vmin.f32 %v244, 8000.0
        %v246 = vsub.f32 %v245, %v239
        %v247 = vld [vmem:[%s2] sm:$0x1]
        %249 = vset.pattern.permute.xlu0 0
        %250 = vperm.xlu0 %249, %v239
        %v251 = vpop.permute.xlu0 %250
        %v254 = vlaneseq
        %v255 = vshrl.u32 %v254, 7
        %v256 = vsub.s32 0, %v255
        %v257 = vrot.slane %v247, %v256
        %v259 = vmul.f32 %v251, %v257
        %261 = vset.pattern.permute.xlu0 0
        %262 = vperm.xlu0 %261, %v246
        %v263 = vpop.permute.xlu0 %262
        %v265 = vmul.f32 %v263, %v257
        %v266 = vadd.f32 %v259, %v265
        %v267 = vand.u32 2147483647, %v266
        %vm268 = vcmp.le.f32.partialorder %v267, 0.7853982
        %vm269 = vcmp.lt.s32.totalorder %v266, 0
        %v270 = vand.u32 %v266, 2139095040
        %v271 = vshrl.u32 %v270, 23
        %v272 = vsub.s32 %v271, 127
        %v273 = vand.u32 2147483647, %v266
        %v274 = vand.u32 %v273, 8388607
        %v275 = vor.u32 %v274, 8388608
        %v276 = vsub.s32 0, %v275
        %v277 = vadd.s32 %v272, 1
        %vm278 = vcmp.gt.s32.totalorder %v277, 0
        %v279 = vsel %vm278, %v277, 0
        %v280 = vshrl.u32 %v279, 5
        %v281 = vand.u32 %v279, 31
        %v282 = vsub.s32 32, %v281
        %v283 = vshrl.u32 683565275, %v282
        %v284 = vshll.u32 683565275, %v281
        %v285 = vshrl.u32 2475754826, %v282
        %v286 = vor.u32 %v284, %v285
        %v287 = vshll.u32 2475754826, %v281
        %v288 = vshrl.u32 2131351028, %v282
        %v289 = vor.u32 %v287, %v288
        %v290 = vshll.u32 2131351028, %v281
        %v291 = vshrl.u32 2102212464, %v282
        %v292 = vor.u32 %v290, %v291
        %v293 = vshll.u32 2102212464, %v281
        %v294 = vshrl.u32 920167782, %v282
        %v295 = vor.u32 %v293, %v294
        %v296 = vshll.u32 920167782, %v281
        %v297 = vshrl.u32 1326507024, %v282
        %v298 = vor.u32 %v296, %v297
        %vm299 = vcmp.lt.s32.totalorder %v280, 1
        %vm300 = vcmp.lt.s32.totalorder %v280, 2
        %vm301 = vcmp.lt.s32.totalorder %v280, 3
        %vm302 = vcmp.lt.s32.totalorder %v280, 4
        %v303 = vsel %vm299, %v283, %v286
        %v304 = vsel %vm302, %v292, 2102212464
        %v305 = vsel %vm301, %v289, %v304
        %v306 = vsel %vm300, %v303, %v305
        %v307 = vsel %vm299, %v286, %v289
        %v308 = vsel %vm302, %v295, 920167782
        %v309 = vsel %vm301, %v292, %v308
        %v310 = vsel %vm300, %v307, %v309
        %v311 = vsel %vm299, %v289, %v292
        %v312 = vsel %vm302, %v298, 1326507024
        %v313 = vsel %vm301, %v295, %v312
        %v314 = vsel %vm300, %v311, %v313
        %v315 = vshll.u32 %v275, 8
        %v316 = vmul.u32.u64.compose %v315, %v314
        %v317 = vextract.low.u32 %v316
        %v318 = vextract.high.u32 %v316
        %v319 = vmul.u32.u64.compose %v315, %v310
        %v320 = vextract.low.u32 %v319
        %v321 = vextract.high.u32 %v319
        %v322 = vmul.u32 %v315, %v306
        %v323 = vadd.s32 %v318, %v320
        %vm324 = vc.u32 %v318, %v320
        %v325 = vadd.s32 %v321, 1
        %v326 = vsel %vm324, %v325, %v321
        %v327 = vadd.s32 %v322, %v326
        %v328 = vadd.s32 %v327, 536870912
        %v329 = vshrl.u32 %v328, 30
        %v330 = vshll.u32 %v329, 30
        %v331 = vsub.s32 %v327, %v330
        %vm332 = vcmp.lt.s32.totalorder %v331, 0
        %v333 = vsub.s32 0, %v331
        %v334 = vsel %vm332, %v333, %v331
        %v335 = vclz %v334
        %v336 = vsub.s32 %v335, 2
        %vm337 = vcmp.gt.s32.totalorder 0, %v336
        %v338 = vsel %vm337, 0, %v336
        %v339 = vsub.s32 32, %v338
        %v340 = vshll.u32 %v331, %v338
        %v341 = vshrl.u32 %v323, %v339
        %v342 = vor.u32 %v340, %v341
        %v343 = vsub.s32 4294967266, %v338
        %v344 = vadd.s32 %v343, 127
        %v345 = vshll.u32 %v344, 23
        %v346 = vor.u32 4788187, %v345
        %v347 = vand.u32 2147483647, %v346
        %v349 = vcvt.s32.f32 %v342
        %v350 = vmul.f32 %v349, %v347
        %v351 = vxor.u32 %v350, 2147483648
        %v352 = vsel %vm269, %v351, %v350
        %v353 = vsub.s32 4, %v329
        %v354 = vsel %vm269, %v353, %v329
        %v355 = vsel %vm268, %v266, %v352
        %v356 = vsel %vm268, 0, %v354
        %v357 = vcosq.f32.pop %v355
        %v358 = vsinq.f32.pop %v355
        %vm359 = vweird.f32 %v266
        %v360 = vadd.s32 %v356, 3
        %v361 = vand.u32 %v360, 3
        %vm362 = vcmp.lt.s32.totalorder %v361, 2
        %vm363 = vcmp.eq.s32.totalorder %v361, 0
        %v364 = vxor.u32 %v358, 2147483648
        %v365 = vsel %vm363, %v357, %v364
        %vm366 = vcmp.eq.s32.totalorder %v361, 2
        %v367 = vxor.u32 %v357, 2147483648
        %v368 = vsel %vm366, %v367, %v358
        %v369 = vsel %vm362, %v365, %v368
        %v370 = vsel %vm359, nan, %v369
        %v371 = vand.u32 2147483647, %v259
        %vm372 = vcmp.le.f32.partialorder %v371, 0.7853982
        %vm373 = vcmp.lt.s32.totalorder %v259, 0
        %v374 = vand.u32 %v259, 2139095040
        %v375 = vshrl.u32 %v374, 23
        %v376 = vsub.s32 %v375, 127
        %v377 = vand.u32 2147483647, %v259
        %v378 = vand.u32 %v377, 8388607
        %v379 = vor.u32 %v378, 8388608
        %v380 = vsub.s32 0, %v379
        %v381 = vadd.s32 %v376, 1
        %vm382 = vcmp.gt.s32.totalorder %v381, 0
        %v383 = vsel %vm382, %v381, 0
        %v384 = vshrl.u32 %v383, 5
        %v385 = vand.u32 %v383, 31
        %v386 = vsub.s32 32, %v385
        %v387 = vshrl.u32 683565275, %v386
        %v388 = vshll.u32 683565275, %v385
        %v389 = vshrl.u32 2475754826, %v386
        %v390 = vor.u32 %v388, %v389
        %v391 = vshll.u32 2475754826, %v385
        %v392 = vshrl.u32 2131351028, %v386
        %v393 = vor.u32 %v391, %v392
        %v394 = vshll.u32 2131351028, %v385
        %v395 = vshrl.u32 2102212464, %v386
        %v396 = vor.u32 %v394, %v395
        %v397 = vshll.u32 2102212464, %v385
        %v398 = vshrl.u32 920167782, %v386
        %v399 = vor.u32 %v397, %v398
        %v400 = vshll.u32 920167782, %v385
        %v401 = vshrl.u32 1326507024, %v386
        %v402 = vor.u32 %v400, %v401
        %vm403 = vcmp.lt.s32.totalorder %v384, 1
        %vm404 = vcmp.lt.s32.totalorder %v384, 2
        %vm405 = vcmp.lt.s32.totalorder %v384, 3
        %vm406 = vcmp.lt.s32.totalorder %v384, 4
        %v407 = vsel %vm403, %v387, %v390
        %v408 = vsel %vm406, %v396, 2102212464
        %v409 = vsel %vm405, %v393, %v408
        %v410 = vsel %vm404, %v407, %v409
        %v411 = vsel %vm403, %v390, %v393
        %v412 = vsel %vm406, %v399, 920167782
        %v413 = vsel %vm405, %v396, %v412
        %v414 = vsel %vm404, %v411, %v413
        %v415 = vsel %vm403, %v393, %v396
        %v416 = vsel %vm406, %v402, 1326507024
        %v417 = vsel %vm405, %v399, %v416
        %v418 = vsel %vm404, %v415, %v417
        %v419 = vshll.u32 %v379, 8
        %v420 = vmul.u32.u64.compose %v419, %v418
        %v421 = vextract.low.u32 %v420
        %v422 = vextract.high.u32 %v420
        %v423 = vmul.u32.u64.compose %v419, %v414
        %v424 = vextract.low.u32 %v423
        %v425 = vextract.high.u32 %v423
        %v426 = vmul.u32 %v419, %v410
        %v427 = vadd.s32 %v422, %v424
        %vm428 = vc.u32 %v422, %v424
        %v429 = vadd.s32 %v425, 1
        %v430 = vsel %vm428, %v429, %v425
        %v431 = vadd.s32 %v426, %v430
        %v432 = vadd.s32 %v431, 536870912
        %v433 = vshrl.u32 %v432, 30
        %v434 = vshll.u32 %v433, 30
        %v435 = vsub.s32 %v431, %v434
        %vm436 = vcmp.lt.s32.totalorder %v435, 0
        %v437 = vsub.s32 0, %v435
        %v438 = vsel %vm436, %v437, %v435
        %v439 = vclz %v438
        %v440 = vsub.s32 %v439, 2
        %vm441 = vcmp.gt.s32.totalorder 0, %v440
        %v442 = vsel %vm441, 0, %v440
        %v443 = vsub.s32 32, %v442
        %v444 = vshll.u32 %v435, %v442
        %v445 = vshrl.u32 %v427, %v443
        %v446 = vor.u32 %v444, %v445
        %v447 = vsub.s32 4294967266, %v442
        %v448 = vadd.s32 %v447, 127
        %v449 = vshll.u32 %v448, 23
        %v450 = vor.u32 4788187, %v449
        %v451 = vand.u32 2147483647, %v450
        %v453 = vcvt.s32.f32 %v446
        %v454 = vmul.f32 %v453, %v451
        %v455 = vxor.u32 %v454, 2147483648
        %v456 = vsel %vm373, %v455, %v454
        %v457 = vsub.s32 4, %v433
        %v458 = vsel %vm373, %v457, %v433
        %v459 = vsel %vm372, %v259, %v456
        %v460 = vsel %vm372, 0, %v458
        %v461 = vcosq.f32.pop %v459
        %v462 = vsinq.f32.pop %v459
        %vm463 = vweird.f32 %v259
        %v464 = vadd.s32 %v460, 3
        %v465 = vand.u32 %v464, 3
        %vm466 = vcmp.lt.s32.totalorder %v465, 2
        %vm467 = vcmp.eq.s32.totalorder %v465, 0
        %v468 = vxor.u32 %v462, 2147483648
        %v469 = vsel %vm467, %v461, %v468
        %vm470 = vcmp.eq.s32.totalorder %v465, 2
        %v471 = vxor.u32 %v461, 2147483648
        %v472 = vsel %vm470, %v471, %v462
        %v473 = vsel %vm466, %v469, %v472
        %v474 = vsel %vm463, nan, %v473
        %v475 = vsub.f32 %v370, %v474
        %v476 = vadd.f32 %v247, 1e-08
        %v478 = vlaneseq
        %v479 = vshrl.u32 %v478, 7
        %v480 = vsub.s32 0, %v479
        %v481 = vrot.slane %v476, %v480
        %v483 = vrcp.pop %v481
        %v484 = vmul.f32 %v475, %v483
        %v485 = vld [vmem:[#allocation3] sm:$0x1]
        %v487 = vlaneseq
        %v488 = vshrl.u32 %v487, 7
        %v489 = vsub.s32 0, %v488
        %v490 = vrot.slane %v485, %v489
        %v492 = vmul.f32 %v484, %v490
        %v493 = vmul.f32 %v246, 2.0
        %v494 = vadd.f32 %v493, 1e-08
        %496 = vset.pattern.permute.xlu0 0
        %497 = vperm.xlu0 %496, %v494
        %v498 = vpop.permute.xlu0 %497
        %v500 = vrcp.pop %v498
        %v501 = vmul.f32 %v492, %v500
        %502 = vst [vmem:[#allocation2] sm:$0xff] 0.0
        %503 = vst [vmem:[#allocation2 + $0x18] sm:$0xff] 0.0
        %v504 = vld [vmem:[%s235] sm:$0xff]
        %v505 = vld [vmem:[%s235 + $0x8] sm:$0xff]
        %506 = vst [vmem:[#allocation2 + $0x8] sm:$0xff] %v504
        %507 = vst [vmem:[#allocation2 + $0x10] sm:$0xff] %v505
        %v508 = vld [vmem:[#allocation2] sm:$0xff]
        %v509 = vld [vmem:[#allocation2 + $0x8] sm:$0xff]
        %v510 = vld [vmem:[#allocation2 + $0x10] sm:$0xff]
        %512 = vset.pattern.permute.xlu0 0
        %513 = vperm.xlu0 %512, %v501
        %v514 = vpop.permute.xlu0 %513
        %v516 = vlaneseq
        %v517 = vshrl.u32 %v516, 7
        %v518 = vsub.s32 0, %v517
        %v519 = vrot.slane %v508, %v518
        %v520 = vlaneseq
        %v521 = vshrl.u32 %v520, 7
        %v522 = vsub.s32 0, %v521
        %v523 = vrot.slane %v509, %v522
        %v524 = vlaneseq
        %v525 = vshrl.u32 %v524, 7
        %v526 = vsub.s32 0, %v525
        %v527 = vrot.slane %v510, %v526
        %v528 = vmul.f32 %v514, %v519
        %v529 = vmul.f32 %v514, %v523
        %v530 = vmul.f32 %v514, %v527
        %v531 = vadd.f32 %v528, 0.0
        %v532 = vadd.f32 %v529, 0.0
        %v533 = vadd.f32 %v530, 0.0
        %v534 = vlaneseq
        %v535 = vshrl.u32 %v534, 7
        %v536 = vsub.s32 1, %v535
        %v537 = vrot.slane %v508, %v536
        %v538 = vlaneseq
        %v539 = vshrl.u32 %v538, 7
        %v540 = vsub.s32 1, %v539
        %v541 = vrot.slane %v509, %v540
        %v542 = vlaneseq
        %v543 = vshrl.u32 %v542, 7
        %v544 = vsub.s32 1, %v543
        %v545 = vrot.slane %v510, %v544
        %v546 = vmul.f32 %v514, %v537
        %v547 = vmul.f32 %v514, %v541
        %v548 = vmul.f32 %v514, %v545
        %v549 = vadd.f32 %v546, 0.0
        %v550 = vadd.f32 %v547, 0.0
        %v551 = vadd.f32 %v548, 0.0
        %v552 = vlaneseq
        %v553 = vshrl.u32 %v552, 7
        %v554 = vsub.s32 2, %v553
        %v555 = vrot.slane %v508, %v554
        %v556 = vlaneseq
        %v557 = vshrl.u32 %v556, 7
        %v558 = vsub.s32 2, %v557
        %v559 = vrot.slane %v509, %v558
        %v560 = vlaneseq
        %v561 = vshrl.u32 %v560, 7
        %v562 = vsub.s32 2, %v561
        %v563 = vrot.slane %v510, %v562
        %v564 = vmul.f32 %v514, %v555
        %v565 = vmul.f32 %v514, %v559
        %v566 = vmul.f32 %v514, %v563
        %v567 = vadd.f32 %v564, 0.0
        %v568 = vadd.f32 %v565, 0.0
        %v569 = vadd.f32 %v566, 0.0
        %v570 = vlaneseq
        %v571 = vshrl.u32 %v570, 7
        %v572 = vsub.s32 3, %v571
        %v573 = vrot.slane %v508, %v572
        %v574 = vlaneseq
        %v575 = vshrl.u32 %v574, 7
        %v576 = vsub.s32 3, %v575
        %v577 = vrot.slane %v509, %v576
        %v578 = vlaneseq
        %v579 = vshrl.u32 %v578, 7
        %v580 = vsub.s32 3, %v579
        %v581 = vrot.slane %v510, %v580
        %v582 = vmul.f32 %v514, %v573
        %v583 = vmul.f32 %v514, %v577
        %v584 = vmul.f32 %v514, %v581
        %v585 = vadd.f32 %v582, 0.0
        %v586 = vadd.f32 %v583, 0.0
        %v587 = vadd.f32 %v584, 0.0
        %v588 = vlaneseq
        %v589 = vshrl.u32 %v588, 7
        %v590 = vsub.s32 4, %v589
        %v591 = vrot.slane %v508, %v590
        %v592 = vlaneseq
        %v593 = vshrl.u32 %v592, 7
        %v594 = vsub.s32 4, %v593
        %v595 = vrot.slane %v509, %v594
        %v596 = vlaneseq
        %v597 = vshrl.u32 %v596, 7
        %v598 = vsub.s32 4, %v597
        %v599 = vrot.slane %v510, %v598
        %v600 = vmul.f32 %v514, %v591
        %v601 = vmul.f32 %v514, %v595
        %v602 = vmul.f32 %v514, %v599
        %v603 = vadd.f32 %v600, 0.0
        %v604 = vadd.f32 %v601, 0.0
        %v605 = vadd.f32 %v602, 0.0
        %v606 = vlaneseq
        %v607 = vshrl.u32 %v606, 7
        %v608 = vsub.s32 5, %v607
        %v609 = vrot.slane %v508, %v608
        %v610 = vlaneseq
        %v611 = vshrl.u32 %v610, 7
        %v612 = vsub.s32 5, %v611
        %v613 = vrot.slane %v509, %v612
        %v614 = vlaneseq
        %v615 = vshrl.u32 %v614, 7
        %v616 = vsub.s32 5, %v615
        %v617 = vrot.slane %v510, %v616
        %v618 = vmul.f32 %v514, %v609
        %v619 = vmul.f32 %v514, %v613
        %v620 = vmul.f32 %v514, %v617
        %v621 = vadd.f32 %v618, 0.0
        %v622 = vadd.f32 %v619, 0.0
        %v623 = vadd.f32 %v620, 0.0
        %v624 = vlaneseq
        %v625 = vshrl.u32 %v624, 7
        %v626 = vsub.s32 6, %v625
        %v627 = vrot.slane %v508, %v626
        %v628 = vlaneseq
        %v629 = vshrl.u32 %v628, 7
        %v630 = vsub.s32 6, %v629
        %v631 = vrot.slane %v509, %v630
        %v632 = vlaneseq
        %v633 = vshrl.u32 %v632, 7
        %v634 = vsub.s32 6, %v633
        %v635 = vrot.slane %v510, %v634
        %v636 = vmul.f32 %v514, %v627
        %v637 = vmul.f32 %v514, %v631
        %v638 = vmul.f32 %v514, %v635
        %v639 = vadd.f32 %v636, 0.0
        %v640 = vadd.f32 %v637, 0.0
        %v641 = vadd.f32 %v638, 0.0
        %v642 = vlaneseq
        %v643 = vshrl.u32 %v642, 7
        %v644 = vsub.s32 7, %v643
        %v645 = vrot.slane %v508, %v644
        %v646 = vlaneseq
        %v647 = vshrl.u32 %v646, 7
        %v648 = vsub.s32 7, %v647
        %v649 = vrot.slane %v509, %v648
        %v650 = vlaneseq
        %v651 = vshrl.u32 %v650, 7
        %v652 = vsub.s32 7, %v651
        %v653 = vrot.slane %v510, %v652
        %v654 = vmul.f32 %v514, %v645
        %v655 = vmul.f32 %v514, %v649
        %v656 = vmul.f32 %v514, %v653
        %v657 = vadd.f32 %v654, 0.0
        %v658 = vadd.f32 %v655, 0.0
        %v659 = vadd.f32 %v656, 0.0
        %660 = vset.pattern.permute.xlu0 1
        %661 = vperm.xlu0 %660, %v501
        %v662 = vpop.permute.xlu0 %661
        %v664 = vmul.f32 %v662, %v519
        %v665 = vmul.f32 %v662, %v523
        %v666 = vmul.f32 %v662, %v527
        %670 = vrot.lane.b32.xlu0 %v664, 127
        %v671 = vpop.permute.xlu0 %670
        %672 = vrot.lane.b32.xlu0 %v665, 127
        %v673 = vpop.permute.xlu0 %672
        %674 = vrot.lane.b32.xlu0 %v666, 127
        %v675 = vpop.permute.xlu0 %674
        %vm676 = vcmask 1039360
        %v677 = vsel %vm676, %v671, %v673
        %v678 = vsel %vm676, %v673, %v675
        %v682 = vadd.f32 %v531, %v677
        %v683 = vadd.f32 %v532, %v678
        %v684 = vadd.f32 %v533, %v675
        %v685 = vmul.f32 %v662, %v537
        %v686 = vmul.f32 %v662, %v541
        %v687 = vmul.f32 %v662, %v545
        %691 = vrot.lane.b32.xlu0 %v685, 127
        %v692 = vpop.permute.xlu0 %691
        %693 = vrot.lane.b32.xlu0 %v686, 127
        %v694 = vpop.permute.xlu0 %693
        %695 = vrot.lane.b32.xlu0 %v687, 127
        %v696 = vpop.permute.xlu0 %695
        %v697 = vsel %vm676, %v692, %v694
        %v698 = vsel %vm676, %v694, %v696
        %v702 = vadd.f32 %v549, %v697
        %v703 = vadd.f32 %v550, %v698
        %v704 = vadd.f32 %v551, %v696
        %v705 = vmul.f32 %v662, %v555
        %v706 = vmul.f32 %v662, %v559
        %v707 = vmul.f32 %v662, %v563
        %711 = vrot.lane.b32.xlu0 %v705, 127
        %v712 = vpop.permute.xlu0 %711
        %713 = vrot.lane.b32.xlu0 %v706, 127
        %v714 = vpop.permute.xlu0 %713
        %715 = vrot.lane.b32.xlu0 %v707, 127
        %v716 = vpop.permute.xlu0 %715
        %v717 = vsel %vm676, %v712, %v714
        %v718 = vsel %vm676, %v714, %v716
        %v722 = vadd.f32 %v567, %v717
        %v723 = vadd.f32 %v568, %v718
        %v724 = vadd.f32 %v569, %v716
        %v725 = vmul.f32 %v662, %v573
        %v726 = vmul.f32 %v662, %v577
        %v727 = vmul.f32 %v662, %v581
        %731 = vrot.lane.b32.xlu0 %v725, 127
        %v732 = vpop.permute.xlu0 %731
        %733 = vrot.lane.b32.xlu0 %v726, 127
        %v734 = vpop.permute.xlu0 %733
        %735 = vrot.lane.b32.xlu0 %v727, 127
        %v736 = vpop.permute.xlu0 %735
        %v737 = vsel %vm676, %v732, %v734
        %v738 = vsel %vm676, %v734, %v736
        %v742 = vadd.f32 %v585, %v737
        %v743 = vadd.f32 %v586, %v738
        %v744 = vadd.f32 %v587, %v736
        %v745 = vmul.f32 %v662, %v591
        %v746 = vmul.f32 %v662, %v595
        %v747 = vmul.f32 %v662, %v599
        %751 = vrot.lane.b32.xlu0 %v745, 127
        %v752 = vpop.permute.xlu0 %751
        %753 = vrot.lane.b32.xlu0 %v746, 127
        %v754 = vpop.permute.xlu0 %753
        %755 = vrot.lane.b32.xlu0 %v747, 127
        %v756 = vpop.permute.xlu0 %755
        %v757 = vsel %vm676, %v752, %v754
        %v758 = vsel %vm676, %v754, %v756
        %v762 = vadd.f32 %v603, %v757
        %v763 = vadd.f32 %v604, %v758
        %v764 = vadd.f32 %v605, %v756
        %v765 = vmul.f32 %v662, %v609
        %v766 = vmul.f32 %v662, %v613
        %v767 = vmul.f32 %v662, %v617
        %771 = vrot.lane.b32.xlu0 %v765, 127
        %v772 = vpop.permute.xlu0 %771
        %773 = vrot.lane.b32.xlu0 %v766, 127
        %v774 = vpop.permute.xlu0 %773
        %775 = vrot.lane.b32.xlu0 %v767, 127
        %v776 = vpop.permute.xlu0 %775
        %v777 = vsel %vm676, %v772, %v774
        %v778 = vsel %vm676, %v774, %v776
        %v782 = vadd.f32 %v621, %v777
        %v783 = vadd.f32 %v622, %v778
        %v784 = vadd.f32 %v623, %v776
        %v785 = vmul.f32 %v662, %v627
        %v786 = vmul.f32 %v662, %v631
        %v787 = vmul.f32 %v662, %v635
        %791 = vrot.lane.b32.xlu0 %v785, 127
        %v792 = vpop.permute.xlu0 %791
        %793 = vrot.lane.b32.xlu0 %v786, 127
        %v794 = vpop.permute.xlu0 %793
        %795 = vrot.lane.b32.xlu0 %v787, 127
        %v796 = vpop.permute.xlu0 %795
        %v797 = vsel %vm676, %v792, %v794
        %v798 = vsel %vm676, %v794, %v796
        %v802 = vadd.f32 %v639, %v797
        %v803 = vadd.f32 %v640, %v798
        %v804 = vadd.f32 %v641, %v796
        %v805 = vmul.f32 %v662, %v645
        %v806 = vmul.f32 %v662, %v649
        %v807 = vmul.f32 %v662, %v653
        %811 = vrot.lane.b32.xlu0 %v805, 127
        %v812 = vpop.permute.xlu0 %811
        %813 = vrot.lane.b32.xlu0 %v806, 127
        %v814 = vpop.permute.xlu0 %813
        %815 = vrot.lane.b32.xlu0 %v807, 127
        %v816 = vpop.permute.xlu0 %815
        %v817 = vsel %vm676, %v812, %v814
        %v818 = vsel %vm676, %v814, %v816
        %v822 = vadd.f32 %v657, %v817
        %v823 = vadd.f32 %v658, %v818
        %v824 = vadd.f32 %v659, %v816
        %825 = vset.pattern.permute.xlu0 2
        %826 = vperm.xlu0 %825, %v501
        %v827 = vpop.permute.xlu0 %826
        %v829 = vmul.f32 %v827, %v519
        %v830 = vmul.f32 %v827, %v523
        %v831 = vmul.f32 %v827, %v527
        %835 = vrot.lane.b32.xlu0 %v829, 126
        %v836 = vpop.permute.xlu0 %835
        %837 = vrot.lane.b32.xlu0 %v830, 126
        %v838 = vpop.permute.xlu0 %837
        %839 = vrot.lane.b32.xlu0 %v831, 126
        %v840 = vpop.permute.xlu0 %839
        %vm841 = vcmask 1031168
        %v842 = vsel %vm841, %v836, %v838
        %v843 = vsel %vm841, %v838, %v840
        %v847 = vadd.f32 %v682, %v842
        %v848 = vadd.f32 %v683, %v843
        %v849 = vadd.f32 %v684, %v840
        %v850 = vmul.f32 %v827, %v537
        %v851 = vmul.f32 %v827, %v541
        %v852 = vmul.f32 %v827, %v545
        %856 = vrot.lane.b32.xlu0 %v850, 126
        %v857 = vpop.permute.xlu0 %856
        %858 = vrot.lane.b32.xlu0 %v851, 126
        %v859 = vpop.permute.xlu0 %858
        %860 = vrot.lane.b32.xlu0 %v852, 126
        %v861 = vpop.permute.xlu0 %860
        %v862 = vsel %vm841, %v857, %v859
        %v863 = vsel %vm841, %v859, %v861
        %v867 = vadd.f32 %v702, %v862
        %v868 = vadd.f32 %v703, %v863
        %v869 = vadd.f32 %v704, %v861
        %v870 = vmul.f32 %v827, %v555
        %v871 = vmul.f32 %v827, %v559
        %v872 = vmul.f32 %v827, %v563
        %876 = vrot.lane.b32.xlu0 %v870, 126
        %v877 = vpop.permute.xlu0 %876
        %878 = vrot.lane.b32.xlu0 %v871, 126
        %v879 = vpop.permute.xlu0 %878
        %880 = vrot.lane.b32.xlu0 %v872, 126
        %v881 = vpop.permute.xlu0 %880
        %v882 = vsel %vm841, %v877, %v879
        %v883 = vsel %vm841, %v879, %v881
        %v887 = vadd.f32 %v722, %v882
        %v888 = vadd.f32 %v723, %v883
        %v889 = vadd.f32 %v724, %v881
        %v890 = vmul.f32 %v827, %v573
        %v891 = vmul.f32 %v827, %v577
        %v892 = vmul.f32 %v827, %v581
        %896 = vrot.lane.b32.xlu0 %v890, 126
        %v897 = vpop.permute.xlu0 %896
        %898 = vrot.lane.b32.xlu0 %v891, 126
        %v899 = vpop.permute.xlu0 %898
        %900 = vrot.lane.b32.xlu0 %v892, 126
        %v901 = vpop.permute.xlu0 %900
        %v902 = vsel %vm841, %v897, %v899
        %v903 = vsel %vm841, %v899, %v901
        %v907 = vadd.f32 %v742, %v902
        %v908 = vadd.f32 %v743, %v903
        %v909 = vadd.f32 %v744, %v901
        %v910 = vmul.f32 %v827, %v591
        %v911 = vmul.f32 %v827, %v595
        %v912 = vmul.f32 %v827, %v599
        %916 = vrot.lane.b32.xlu0 %v910, 126
        %v917 = vpop.permute.xlu0 %916
        %918 = vrot.lane.b32.xlu0 %v911, 126
        %v919 = vpop.permute.xlu0 %918
        %920 = vrot.lane.b32.xlu0 %v912, 126
        %v921 = vpop.permute.xlu0 %920
        %v922 = vsel %vm841, %v917, %v919
        %v923 = vsel %vm841, %v919, %v921
        %v927 = vadd.f32 %v762, %v922
        %v928 = vadd.f32 %v763, %v923
        %v929 = vadd.f32 %v764, %v921
        %v930 = vmul.f32 %v827, %v609
        %v931 = vmul.f32 %v827, %v613
        %v932 = vmul.f32 %v827, %v617
        %936 = vrot.lane.b32.xlu0 %v930, 126
        %v937 = vpop.permute.xlu0 %936
        %938 = vrot.lane.b32.xlu0 %v931, 126
        %v939 = vpop.permute.xlu0 %938
        %940 = vrot.lane.b32.xlu0 %v932, 126
        %v941 = vpop.permute.xlu0 %940
        %v942 = vsel %vm841, %v937, %v939
        %v943 = vsel %vm841, %v939, %v941
        %v947 = vadd.f32 %v782, %v942
        %v948 = vadd.f32 %v783, %v943
        %v949 = vadd.f32 %v784, %v941
        %v950 = vmul.f32 %v827, %v627
        %v951 = vmul.f32 %v827, %v631
        %v952 = vmul.f32 %v827, %v635
        %956 = vrot.lane.b32.xlu0 %v950, 126
        %v957 = vpop.permute.xlu0 %956
        %958 = vrot.lane.b32.xlu0 %v951, 126
        %v959 = vpop.permute.xlu0 %958
        %960 = vrot.lane.b32.xlu0 %v952, 126
        %v961 = vpop.permute.xlu0 %960
        %v962 = vsel %vm841, %v957, %v959
        %v963 = vsel %vm841, %v959, %v961
        %v967 = vadd.f32 %v802, %v962
        %v968 = vadd.f32 %v803, %v963
        %v969 = vadd.f32 %v804, %v961
        %v970 = vmul.f32 %v827, %v645
        %v971 = vmul.f32 %v827, %v649
        %v972 = vmul.f32 %v827, %v653
        %976 = vrot.lane.b32.xlu0 %v970, 126
        %v977 = vpop.permute.xlu0 %976
        %978 = vrot.lane.b32.xlu0 %v971, 126
        %v979 = vpop.permute.xlu0 %978
        %980 = vrot.lane.b32.xlu0 %v972, 126
        %v981 = vpop.permute.xlu0 %980
        %v982 = vsel %vm841, %v977, %v979
        %v983 = vsel %vm841, %v979, %v981
        %v987 = vadd.f32 %v822, %v982
        %v988 = vadd.f32 %v823, %v983
        %v989 = vadd.f32 %v824, %v981
        %990 = vset.pattern.permute.xlu0 3
        %991 = vperm.xlu0 %990, %v501
        %v992 = vpop.permute.xlu0 %991
        %v994 = vmul.f32 %v992, %v519
        %v995 = vmul.f32 %v992, %v523
        %v996 = vmul.f32 %v992, %v527
        %1000 = vrot.lane.b32.xlu0 %v994, 125
        %v1001 = vpop.permute.xlu0 %1000
        %1002 = vrot.lane.b32.xlu0 %v995, 125
        %v1003 = vpop.permute.xlu0 %1002
        %1004 = vrot.lane.b32.xlu0 %v996, 125
        %v1005 = vpop.permute.xlu0 %1004
        %vm1006 = vcmask 1022976
        %v1007 = vsel %vm1006, %v1001, %v1003
        %v1008 = vsel %vm1006, %v1003, %v1005
        %v1012 = vadd.f32 %v847, %v1007
        %v1013 = vadd.f32 %v848, %v1008
        %v1014 = vadd.f32 %v849, %v1005
        %v1015 = vmul.f32 %v992, %v537
        %v1016 = vmul.f32 %v992, %v541
        %v1017 = vmul.f32 %v992, %v545
        %1021 = vrot.lane.b32.xlu0 %v1015, 125
        %v1022 = vpop.permute.xlu0 %1021
        %1023 = vrot.lane.b32.xlu0 %v1016, 125
        %v1024 = vpop.permute.xlu0 %1023
        %1025 = vrot.lane.b32.xlu0 %v1017, 125
        %v1026 = vpop.permute.xlu0 %1025
        %v1027 = vsel %vm1006, %v1022, %v1024
        %v1028 = vsel %vm1006, %v1024, %v1026
        %v1032 = vadd.f32 %v867, %v1027
        %v1033 = vadd.f32 %v868, %v1028
        %v1034 = vadd.f32 %v869, %v1026
        %v1035 = vmul.f32 %v992, %v555
        %v1036 = vmul.f32 %v992, %v559
        %v1037 = vmul.f32 %v992, %v563
        %1041 = vrot.lane.b32.xlu0 %v1035, 125
        %v1042 = vpop.permute.xlu0 %1041
        %1043 = vrot.lane.b32.xlu0 %v1036, 125
        %v1044 = vpop.permute.xlu0 %1043
        %1045 = vrot.lane.b32.xlu0 %v1037, 125
        %v1046 = vpop.permute.xlu0 %1045
        %v1047 = vsel %vm1006, %v1042, %v1044
        %v1048 = vsel %vm1006, %v1044, %v1046
        %v1052 = vadd.f32 %v887, %v1047
        %v1053 = vadd.f32 %v888, %v1048
        %v1054 = vadd.f32 %v889, %v1046
        %v1055 = vmul.f32 %v992, %v573
        %v1056 = vmul.f32 %v992, %v577
        %v1057 = vmul.f32 %v992, %v581
        %1061 = vrot.lane.b32.xlu0 %v1055, 125
        %v1062 = vpop.permute.xlu0 %1061
        %1063 = vrot.lane.b32.xlu0 %v1056, 125
        %v1064 = vpop.permute.xlu0 %1063
        %1065 = vrot.lane.b32.xlu0 %v1057, 125
        %v1066 = vpop.permute.xlu0 %1065
        %v1067 = vsel %vm1006, %v1062, %v1064
        %v1068 = vsel %vm1006, %v1064, %v1066
        %v1072 = vadd.f32 %v907, %v1067
        %v1073 = vadd.f32 %v908, %v1068
        %v1074 = vadd.f32 %v909, %v1066
        %v1075 = vmul.f32 %v992, %v591
        %v1076 = vmul.f32 %v992, %v595
        %v1077 = vmul.f32 %v992, %v599
        %1081 = vrot.lane.b32.xlu0 %v1075, 125
        %v1082 = vpop.permute.xlu0 %1081
        %1083 = vrot.lane.b32.xlu0 %v1076, 125
        %v1084 = vpop.permute.xlu0 %1083
        %1085 = vrot.lane.b32.xlu0 %v1077, 125
        %v1086 = vpop.permute.xlu0 %1085
        %v1087 = vsel %vm1006, %v1082, %v1084
        %v1088 = vsel %vm1006, %v1084, %v1086
        %v1092 = vadd.f32 %v927, %v1087
        %v1093 = vadd.f32 %v928, %v1088
        %v1094 = vadd.f32 %v929, %v1086
        %v1095 = vmul.f32 %v992, %v609
        %v1096 = vmul.f32 %v992, %v613
        %v1097 = vmul.f32 %v992, %v617
        %1101 = vrot.lane.b32.xlu0 %v1095, 125
        %v1102 = vpop.permute.xlu0 %1101
        %1103 = vrot.lane.b32.xlu0 %v1096, 125
        %v1104 = vpop.permute.xlu0 %1103
        %1105 = vrot.lane.b32.xlu0 %v1097, 125
        %v1106 = vpop.permute.xlu0 %1105
        %v1107 = vsel %vm1006, %v1102, %v1104
        %v1108 = vsel %vm1006, %v1104, %v1106
        %v1112 = vadd.f32 %v947, %v1107
        %v1113 = vadd.f32 %v948, %v1108
        %v1114 = vadd.f32 %v949, %v1106
        %v1115 = vmul.f32 %v992, %v627
        %v1116 = vmul.f32 %v992, %v631
        %v1117 = vmul.f32 %v992, %v635
        %1121 = vrot.lane.b32.xlu0 %v1115, 125
        %v1122 = vpop.permute.xlu0 %1121
        %1123 = vrot.lane.b32.xlu0 %v1116, 125
        %v1124 = vpop.permute.xlu0 %1123
        %1125 = vrot.lane.b32.xlu0 %v1117, 125
        %v1126 = vpop.permute.xlu0 %1125
        %v1127 = vsel %vm1006, %v1122, %v1124
        %v1128 = vsel %vm1006, %v1124, %v1126
        %v1132 = vadd.f32 %v967, %v1127
        %v1133 = vadd.f32 %v968, %v1128
        %v1134 = vadd.f32 %v969, %v1126
        %v1135 = vmul.f32 %v992, %v645
        %v1136 = vmul.f32 %v992, %v649
        %v1137 = vmul.f32 %v992, %v653
        %1141 = vrot.lane.b32.xlu0 %v1135, 125
        %v1142 = vpop.permute.xlu0 %1141
        %1143 = vrot.lane.b32.xlu0 %v1136, 125
        %v1144 = vpop.permute.xlu0 %1143
        %1145 = vrot.lane.b32.xlu0 %v1137, 125
        %v1146 = vpop.permute.xlu0 %1145
        %v1147 = vsel %vm1006, %v1142, %v1144
        %v1148 = vsel %vm1006, %v1144, %v1146
        %v1152 = vadd.f32 %v987, %v1147
        %v1153 = vadd.f32 %v988, %v1148
        %v1154 = vadd.f32 %v989, %v1146
        %1155 = vset.pattern.permute.xlu0 4
        %1156 = vperm.xlu0 %1155, %v501
        %v1157 = vpop.permute.xlu0 %1156
        %v1159 = vmul.f32 %v1157, %v523
        %v1160 = vmul.f32 %v1157, %v527
        %1163 = vrot.lane.b32.xlu0 %v1159, 124
        %v1164 = vpop.permute.xlu0 %1163
        %1165 = vrot.lane.b32.xlu0 %v1160, 124
        %v1166 = vpop.permute.xlu0 %1165
        %vm1167 = vcmask 1014784
        %v1168 = vsel %vm1167, %v1164, %v1166
        %v1172 = vadd.f32 %v1012, %v1164
        %v1173 = vadd.f32 %v1013, %v1168
        %v1174 = vadd.f32 %v1014, %v1166
        %v1175 = vmul.f32 %v1157, %v541
        %v1176 = vmul.f32 %v1157, %v545
        %1179 = vrot.lane.b32.xlu0 %v1175, 124
        %v1180 = vpop.permute.xlu0 %1179
        %1181 = vrot.lane.b32.xlu0 %v1176, 124
        %v1182 = vpop.permute.xlu0 %1181
        %v1183 = vsel %vm1167, %v1180, %v1182
        %v1187 = vadd.f32 %v1032, %v1180
        %v1188 = vadd.f32 %v1033, %v1183
        %v1189 = vadd.f32 %v1034, %v1182
        %v1190 = vmul.f32 %v1157, %v559
        %v1191 = vmul.f32 %v1157, %v563
        %1194 = vrot.lane.b32.xlu0 %v1190, 124
        %v1195 = vpop.permute.xlu0 %1194
        %1196 = vrot.lane.b32.xlu0 %v1191, 124
        %v1197 = vpop.permute.xlu0 %1196
        %v1198 = vsel %vm1167, %v1195, %v1197
        %v1202 = vadd.f32 %v1052, %v1195
        %v1203 = vadd.f32 %v1053, %v1198
        %v1204 = vadd.f32 %v1054, %v1197
        %v1205 = vmul.f32 %v1157, %v577
        %v1206 = vmul.f32 %v1157, %v581
        %1209 = vrot.lane.b32.xlu0 %v1205, 124
        %v1210 = vpop.permute.xlu0 %1209
        %1211 = vrot.lane.b32.xlu0 %v1206, 124
        %v1212 = vpop.permute.xlu0 %1211
        %v1213 = vsel %vm1167, %v1210, %v1212
        %v1217 = vadd.f32 %v1072, %v1210
        %v1218 = vadd.f32 %v1073, %v1213
        %v1219 = vadd.f32 %v1074, %v1212
        %v1220 = vmul.f32 %v1157, %v595
        %v1221 = vmul.f32 %v1157, %v599
        %1224 = vrot.lane.b32.xlu0 %v1220, 124
        %v1225 = vpop.permute.xlu0 %1224
        %1226 = vrot.lane.b32.xlu0 %v1221, 124
        %v1227 = vpop.permute.xlu0 %1226
        %v1228 = vsel %vm1167, %v1225, %v1227
        %v1232 = vadd.f32 %v1092, %v1225
        %v1233 = vadd.f32 %v1093, %v1228
        %v1234 = vadd.f32 %v1094, %v1227
        %v1235 = vmul.f32 %v1157, %v613
        %v1236 = vmul.f32 %v1157, %v617
        %1239 = vrot.lane.b32.xlu0 %v1235, 124
        %v1240 = vpop.permute.xlu0 %1239
        %1241 = vrot.lane.b32.xlu0 %v1236, 124
        %v1242 = vpop.permute.xlu0 %1241
        %v1243 = vsel %vm1167, %v1240, %v1242
        %v1247 = vadd.f32 %v1112, %v1240
        %v1248 = vadd.f32 %v1113, %v1243
        %v1249 = vadd.f32 %v1114, %v1242
        %v1250 = vmul.f32 %v1157, %v631
        %v1251 = vmul.f32 %v1157, %v635
        %1254 = vrot.lane.b32.xlu0 %v1250, 124
        %v1255 = vpop.permute.xlu0 %1254
        %1256 = vrot.lane.b32.xlu0 %v1251, 124
        %v1257 = vpop.permute.xlu0 %1256
        %v1258 = vsel %vm1167, %v1255, %v1257
        %v1262 = vadd.f32 %v1132, %v1255
        %v1263 = vadd.f32 %v1133, %v1258
        %v1264 = vadd.f32 %v1134, %v1257
        %v1265 = vmul.f32 %v1157, %v649
        %v1266 = vmul.f32 %v1157, %v653
        %1269 = vrot.lane.b32.xlu0 %v1265, 124
        %v1270 = vpop.permute.xlu0 %1269
        %1271 = vrot.lane.b32.xlu0 %v1266, 124
        %v1272 = vpop.permute.xlu0 %1271
        %v1273 = vsel %vm1167, %v1270, %v1272
        %v1277 = vadd.f32 %v1152, %v1270
        %v1278 = vadd.f32 %v1153, %v1273
        %v1279 = vadd.f32 %v1154, %v1272
        %v1280 = vld [vmem:[#allocation2 + $0x8] sm:$0xff]
        %v1281 = vld [vmem:[#allocation2 + $0x10] sm:$0xff]
        %v1282 = vld [vmem:[#allocation2 + $0x18] sm:$0xff]
        %1283 = vset.pattern.permute.xlu0 5
        %1284 = vperm.xlu0 %1283, %v501
        %v1285 = vpop.permute.xlu0 %1284
        %v1287 = vlaneseq
        %v1288 = vshrl.u32 %v1287, 7
        %v1289 = vsub.s32 0, %v1288
        %v1290 = vrot.slane %v1280, %v1289
        %v1291 = vlaneseq
        %v1292 = vshrl.u32 %v1291, 7
        %v1293 = vsub.s32 0, %v1292
        %v1294 = vrot.slane %v1281, %v1293
        %v1295 = vlaneseq
        %v1296 = vshrl.u32 %v1295, 7
        %v1297 = vsub.s32 0, %v1296
        %v1298 = vrot.slane %v1282, %v1297
        %v1299 = vmul.f32 %v1285, %v1290
        %v1300 = vmul.f32 %v1285, %v1294
        %v1301 = vmul.f32 %v1285, %v1298
        %1305 = vrot.lane.b32.xlu0 %v1299, 123
        %v1306 = vpop.permute.xlu0 %1305
        %1307 = vrot.lane.b32.xlu0 %v1300, 123
        %v1308 = vpop.permute.xlu0 %1307
        %1309 = vrot.lane.b32.xlu0 %v1301, 123
        %v1310 = vpop.permute.xlu0 %1309
        %vm1311 = vcmask 1006592
        %v1312 = vsel %vm1311, %v1306, %v1308
        %v1313 = vsel %vm1311, %v1308, %v1310
        %v1317 = vadd.f32 %v1172, %v1306
        %v1318 = vadd.f32 %v1173, %v1312
        %v1319 = vadd.f32 %v1174, %v1313
        %v1320 = vlaneseq
        %v1321 = vshrl.u32 %v1320, 7
        %v1322 = vsub.s32 1, %v1321
        %v1323 = vrot.slane %v1280, %v1322
        %v1324 = vlaneseq
        %v1325 = vshrl.u32 %v1324, 7
        %v1326 = vsub.s32 1, %v1325
        %v1327 = vrot.slane %v1281, %v1326
        %v1328 = vlaneseq
        %v1329 = vshrl.u32 %v1328, 7
        %v1330 = vsub.s32 1, %v1329
        %v1331 = vrot.slane %v1282, %v1330
        %v1332 = vmul.f32 %v1285, %v1323
        %v1333 = vmul.f32 %v1285, %v1327
        %v1334 = vmul.f32 %v1285, %v1331
        %1338 = vrot.lane.b32.xlu0 %v1332, 123
        %v1339 = vpop.permute.xlu0 %1338
        %1340 = vrot.lane.b32.xlu0 %v1333, 123
        %v1341 = vpop.permute.xlu0 %1340
        %1342 = vrot.lane.b32.xlu0 %v1334, 123
        %v1343 = vpop.permute.xlu0 %1342
        %v1344 = vsel %vm1311, %v1339, %v1341
        %v1345 = vsel %vm1311, %v1341, %v1343
        %v1349 = vadd.f32 %v1187, %v1339
        %v1350 = vadd.f32 %v1188, %v1344
        %v1351 = vadd.f32 %v1189, %v1345
        %v1352 = vlaneseq
        %v1353 = vshrl.u32 %v1352, 7
        %v1354 = vsub.s32 2, %v1353
        %v1355 = vrot.slane %v1280, %v1354
        %v1356 = vlaneseq
        %v1357 = vshrl.u32 %v1356, 7
        %v1358 = vsub.s32 2, %v1357
        %v1359 = vrot.slane %v1281, %v1358
        %v1360 = vlaneseq
        %v1361 = vshrl.u32 %v1360, 7
        %v1362 = vsub.s32 2, %v1361
        %v1363 = vrot.slane %v1282, %v1362
        %v1364 = vmul.f32 %v1285, %v1355
        %v1365 = vmul.f32 %v1285, %v1359
        %v1366 = vmul.f32 %v1285, %v1363
        %1370 = vrot.lane.b32.xlu0 %v1364, 123
        %v1371 = vpop.permute.xlu0 %1370
        %1372 = vrot.lane.b32.xlu0 %v1365, 123
        %v1373 = vpop.permute.xlu0 %1372
        %1374 = vrot.lane.b32.xlu0 %v1366, 123
        %v1375 = vpop.permute.xlu0 %1374
        %v1376 = vsel %vm1311, %v1371, %v1373
        %v1377 = vsel %vm1311, %v1373, %v1375
        %v1381 = vadd.f32 %v1202, %v1371
        %v1382 = vadd.f32 %v1203, %v1376
        %v1383 = vadd.f32 %v1204, %v1377
        %v1384 = vlaneseq
        %v1385 = vshrl.u32 %v1384, 7
        %v1386 = vsub.s32 3, %v1385
        %v1387 = vrot.slane %v1280, %v1386
        %v1388 = vlaneseq
        %v1389 = vshrl.u32 %v1388, 7
        %v1390 = vsub.s32 3, %v1389
        %v1391 = vrot.slane %v1281, %v1390
        %v1392 = vlaneseq
        %v1393 = vshrl.u32 %v1392, 7
        %v1394 = vsub.s32 3, %v1393
        %v1395 = vrot.slane %v1282, %v1394
        %v1396 = vmul.f32 %v1285, %v1387
        %v1397 = vmul.f32 %v1285, %v1391
        %v1398 = vmul.f32 %v1285, %v1395
        %1402 = vrot.lane.b32.xlu0 %v1396, 123
        %v1403 = vpop.permute.xlu0 %1402
        %1404 = vrot.lane.b32.xlu0 %v1397, 123
        %v1405 = vpop.permute.xlu0 %1404
        %1406 = vrot.lane.b32.xlu0 %v1398, 123
        %v1407 = vpop.permute.xlu0 %1406
        %v1408 = vsel %vm1311, %v1403, %v1405
        %v1409 = vsel %vm1311, %v1405, %v1407
        %v1413 = vadd.f32 %v1217, %v1403
        %v1414 = vadd.f32 %v1218, %v1408
        %v1415 = vadd.f32 %v1219, %v1409
        %v1416 = vlaneseq
        %v1417 = vshrl.u32 %v1416, 7
        %v1418 = vsub.s32 4, %v1417
        %v1419 = vrot.slane %v1280, %v1418
        %v1420 = vlaneseq
        %v1421 = vshrl.u32 %v1420, 7
        %v1422 = vsub.s32 4, %v1421
        %v1423 = vrot.slane %v1281, %v1422
        %v1424 = vlaneseq
        %v1425 = vshrl.u32 %v1424, 7
        %v1426 = vsub.s32 4, %v1425
        %v1427 = vrot.slane %v1282, %v1426
        %v1428 = vmul.f32 %v1285, %v1419
        %v1429 = vmul.f32 %v1285, %v1423
        %v1430 = vmul.f32 %v1285, %v1427
        %1434 = vrot.lane.b32.xlu0 %v1428, 123
        %v1435 = vpop.permute.xlu0 %1434
        %1436 = vrot.lane.b32.xlu0 %v1429, 123
        %v1437 = vpop.permute.xlu0 %1436
        %1438 = vrot.lane.b32.xlu0 %v1430, 123
        %v1439 = vpop.permute.xlu0 %1438
        %v1440 = vsel %vm1311, %v1435, %v1437
        %v1441 = vsel %vm1311, %v1437, %v1439
        %v1445 = vadd.f32 %v1232, %v1435
        %v1446 = vadd.f32 %v1233, %v1440
        %v1447 = vadd.f32 %v1234, %v1441
        %v1448 = vlaneseq
        %v1449 = vshrl.u32 %v1448, 7
        %v1450 = vsub.s32 5, %v1449
        %v1451 = vrot.slane %v1280, %v1450
        %v1452 = vlaneseq
        %v1453 = vshrl.u32 %v1452, 7
        %v1454 = vsub.s32 5, %v1453
        %v1455 = vrot.slane %v1281, %v1454
        %v1456 = vlaneseq
        %v1457 = vshrl.u32 %v1456, 7
        %v1458 = vsub.s32 5, %v1457
        %v1459 = vrot.slane %v1282, %v1458
        %v1460 = vmul.f32 %v1285, %v1451
        %v1461 = vmul.f32 %v1285, %v1455
        %v1462 = vmul.f32 %v1285, %v1459
        %1466 = vrot.lane.b32.xlu0 %v1460, 123
        %v1467 = vpop.permute.xlu0 %1466
        %1468 = vrot.lane.b32.xlu0 %v1461, 123
        %v1469 = vpop.permute.xlu0 %1468
        %1470 = vrot.lane.b32.xlu0 %v1462, 123
        %v1471 = vpop.permute.xlu0 %1470
        %v1472 = vsel %vm1311, %v1467, %v1469
        %v1473 = vsel %vm1311, %v1469, %v1471
        %v1477 = vadd.f32 %v1247, %v1467
        %v1478 = vadd.f32 %v1248, %v1472
        %v1479 = vadd.f32 %v1249, %v1473
        %v1480 = vlaneseq
        %v1481 = vshrl.u32 %v1480, 7
        %v1482 = vsub.s32 6, %v1481
        %v1483 = vrot.slane %v1280, %v1482
        %v1484 = vlaneseq
        %v1485 = vshrl.u32 %v1484, 7
        %v1486 = vsub.s32 6, %v1485
        %v1487 = vrot.slane %v1281, %v1486
        %v1488 = vlaneseq
        %v1489 = vshrl.u32 %v1488, 7
        %v1490 = vsub.s32 6, %v1489
        %v1491 = vrot.slane %v1282, %v1490
        %v1492 = vmul.f32 %v1285, %v1483
        %v1493 = vmul.f32 %v1285, %v1487
        %v1494 = vmul.f32 %v1285, %v1491
        %1498 = vrot.lane.b32.xlu0 %v1492, 123
        %v1499 = vpop.permute.xlu0 %1498
        %1500 = vrot.lane.b32.xlu0 %v1493, 123
        %v1501 = vpop.permute.xlu0 %1500
        %1502 = vrot.lane.b32.xlu0 %v1494, 123
        %v1503 = vpop.permute.xlu0 %1502
        %v1504 = vsel %vm1311, %v1499, %v1501
        %v1505 = vsel %vm1311, %v1501, %v1503
        %v1509 = vadd.f32 %v1262, %v1499
        %v1510 = vadd.f32 %v1263, %v1504
        %v1511 = vadd.f32 %v1264, %v1505
        %v1512 = vlaneseq
        %v1513 = vshrl.u32 %v1512, 7
        %v1514 = vsub.s32 7, %v1513
        %v1515 = vrot.slane %v1280, %v1514
        %v1516 = vlaneseq
        %v1517 = vshrl.u32 %v1516, 7
        %v1518 = vsub.s32 7, %v1517
        %v1519 = vrot.slane %v1281, %v1518
        %v1520 = vlaneseq
        %v1521 = vshrl.u32 %v1520, 7
        %v1522 = vsub.s32 7, %v1521
        %v1523 = vrot.slane %v1282, %v1522
        %v1524 = vmul.f32 %v1285, %v1515
        %v1525 = vmul.f32 %v1285, %v1519
        %v1526 = vmul.f32 %v1285, %v1523
        %1530 = vrot.lane.b32.xlu0 %v1524, 123
        %v1531 = vpop.permute.xlu0 %1530
        %1532 = vrot.lane.b32.xlu0 %v1525, 123
        %v1533 = vpop.permute.xlu0 %1532
        %1534 = vrot.lane.b32.xlu0 %v1526, 123
        %v1535 = vpop.permute.xlu0 %1534
        %v1536 = vsel %vm1311, %v1531, %v1533
        %v1537 = vsel %vm1311, %v1533, %v1535
        %v1541 = vadd.f32 %v1277, %v1531
        %v1542 = vadd.f32 %v1278, %v1536
        %v1543 = vadd.f32 %v1279, %v1537
        %1544 = vset.pattern.permute.xlu0 6
        %1545 = vperm.xlu0 %1544, %v501
        %v1546 = vpop.permute.xlu0 %1545
        %v1548 = vmul.f32 %v1546, %v1290
        %v1549 = vmul.f32 %v1546, %v1294
        %v1550 = vmul.f32 %v1546, %v1298
        %1554 = vrot.lane.b32.xlu0 %v1548, 122
        %v1555 = vpop.permute.xlu0 %1554
        %1556 = vrot.lane.b32.xlu0 %v1549, 122
        %v1557 = vpop.permute.xlu0 %1556
        %1558 = vrot.lane.b32.xlu0 %v1550, 122
        %v1559 = vpop.permute.xlu0 %1558
        %vm1560 = vcmask 998400
        %v1561 = vsel %vm1560, %v1555, %v1557
        %v1562 = vsel %vm1560, %v1557, %v1559
        %v1566 = vadd.f32 %v1317, %v1555
        %v1567 = vadd.f32 %v1318, %v1561
        %v1568 = vadd.f32 %v1319, %v1562
        %v1569 = vmul.f32 %v1546, %v1323
        %v1570 = vmul.f32 %v1546, %v1327
        %v1571 = vmul.f32 %v1546, %v1331
        %1575 = vrot.lane.b32.xlu0 %v1569, 122
        %v1576 = vpop.permute.xlu0 %1575
        %1577 = vrot.lane.b32.xlu0 %v1570, 122
        %v1578 = vpop.permute.xlu0 %1577
        %1579 = vrot.lane.b32.xlu0 %v1571, 122
        %v1580 = vpop.permute.xlu0 %1579
        %v1581 = vsel %vm1560, %v1576, %v1578
        %v1582 = vsel %vm1560, %v1578, %v1580
        %v1586 = vadd.f32 %v1349, %v1576
        %v1587 = vadd.f32 %v1350, %v1581
        %v1588 = vadd.f32 %v1351, %v1582
        %v1589 = vmul.f32 %v1546, %v1355
        %v1590 = vmul.f32 %v1546, %v1359
        %v1591 = vmul.f32 %v1546, %v1363
        %1595 = vrot.lane.b32.xlu0 %v1589, 122
        %v1596 = vpop.permute.xlu0 %1595
        %1597 = vrot.lane.b32.xlu0 %v1590, 122
        %v1598 = vpop.permute.xlu0 %1597
        %1599 = vrot.lane.b32.xlu0 %v1591, 122
        %v1600 = vpop.permute.xlu0 %1599
        %v1601 = vsel %vm1560, %v1596, %v1598
        %v1602 = vsel %vm1560, %v1598, %v1600
        %v1606 = vadd.f32 %v1381, %v1596
        %v1607 = vadd.f32 %v1382, %v1601
        %v1608 = vadd.f32 %v1383, %v1602
        %v1609 = vmul.f32 %v1546, %v1387
        %v1610 = vmul.f32 %v1546, %v1391
        %v1611 = vmul.f32 %v1546, %v1395
        %1615 = vrot.lane.b32.xlu0 %v1609, 122
        %v1616 = vpop.permute.xlu0 %1615
        %1617 = vrot.lane.b32.xlu0 %v1610, 122
        %v1618 = vpop.permute.xlu0 %1617
        %1619 = vrot.lane.b32.xlu0 %v1611, 122
        %v1620 = vpop.permute.xlu0 %1619
        %v1621 = vsel %vm1560, %v1616, %v1618
        %v1622 = vsel %vm1560, %v1618, %v1620
        %v1626 = vadd.f32 %v1413, %v1616
        %v1627 = vadd.f32 %v1414, %v1621
        %v1628 = vadd.f32 %v1415, %v1622
        %v1629 = vmul.f32 %v1546, %v1419
        %v1630 = vmul.f32 %v1546, %v1423
        %v1631 = vmul.f32 %v1546, %v1427
        %1635 = vrot.lane.b32.xlu0 %v1629, 122
        %v1636 = vpop.permute.xlu0 %1635
        %1637 = vrot.lane.b32.xlu0 %v1630, 122
        %v1638 = vpop.permute.xlu0 %1637
        %1639 = vrot.lane.b32.xlu0 %v1631, 122
        %v1640 = vpop.permute.xlu0 %1639
        %v1641 = vsel %vm1560, %v1636, %v1638
        %v1642 = vsel %vm1560, %v1638, %v1640
        %v1646 = vadd.f32 %v1445, %v1636
        %v1647 = vadd.f32 %v1446, %v1641
        %v1648 = vadd.f32 %v1447, %v1642
        %v1649 = vmul.f32 %v1546, %v1451
        %v1650 = vmul.f32 %v1546, %v1455
        %v1651 = vmul.f32 %v1546, %v1459
        %1655 = vrot.lane.b32.xlu0 %v1649, 122
        %v1656 = vpop.permute.xlu0 %1655
        %1657 = vrot.lane.b32.xlu0 %v1650, 122
        %v1658 = vpop.permute.xlu0 %1657
        %1659 = vrot.lane.b32.xlu0 %v1651, 122
        %v1660 = vpop.permute.xlu0 %1659
        %v1661 = vsel %vm1560, %v1656, %v1658
        %v1662 = vsel %vm1560, %v1658, %v1660
        %v1666 = vadd.f32 %v1477, %v1656
        %v1667 = vadd.f32 %v1478, %v1661
        %v1668 = vadd.f32 %v1479, %v1662
        %v1669 = vmul.f32 %v1546, %v1483
        %v1670 = vmul.f32 %v1546, %v1487
        %v1671 = vmul.f32 %v1546, %v1491
        %1675 = vrot.lane.b32.xlu0 %v1669, 122
        %v1676 = vpop.permute.xlu0 %1675
        %1677 = vrot.lane.b32.xlu0 %v1670, 122
        %v1678 = vpop.permute.xlu0 %1677
        %1679 = vrot.lane.b32.xlu0 %v1671, 122
        %v1680 = vpop.permute.xlu0 %1679
        %v1681 = vsel %vm1560, %v1676, %v1678
        %v1682 = vsel %vm1560, %v1678, %v1680
        %v1686 = vadd.f32 %v1509, %v1676
        %v1687 = vadd.f32 %v1510, %v1681
        %v1688 = vadd.f32 %v1511, %v1682
        %v1689 = vmul.f32 %v1546, %v1515
        %v1690 = vmul.f32 %v1546, %v1519
        %v1691 = vmul.f32 %v1546, %v1523
        %1695 = vrot.lane.b32.xlu0 %v1689, 122
        %v1696 = vpop.permute.xlu0 %1695
        %1697 = vrot.lane.b32.xlu0 %v1690, 122
        %v1698 = vpop.permute.xlu0 %1697
        %1699 = vrot.lane.b32.xlu0 %v1691, 122
        %v1700 = vpop.permute.xlu0 %1699
        %v1701 = vsel %vm1560, %v1696, %v1698
        %v1702 = vsel %vm1560, %v1698, %v1700
        %v1706 = vadd.f32 %v1541, %v1696
        %v1707 = vadd.f32 %v1542, %v1701
        %v1708 = vadd.f32 %v1543, %v1702
        %1709 = vset.pattern.permute.xlu0 7
        %1710 = vperm.xlu0 %1709, %v501
        %v1711 = vpop.permute.xlu0 %1710
        %v1713 = vmul.f32 %v1711, %v1290
        %v1714 = vmul.f32 %v1711, %v1294
        %v1715 = vmul.f32 %v1711, %v1298
        %1719 = vrot.lane.b32.xlu0 %v1713, 121
        %v1720 = vpop.permute.xlu0 %1719
        %1721 = vrot.lane.b32.xlu0 %v1714, 121
        %v1722 = vpop.permute.xlu0 %1721
        %1723 = vrot.lane.b32.xlu0 %v1715, 121
        %v1724 = vpop.permute.xlu0 %1723
        %vm1725 = vcmask 990208
        %v1726 = vsel %vm1725, %v1720, %v1722
        %v1727 = vsel %vm1725, %v1722, %v1724
        %v1731 = vadd.f32 %v1566, %v1720
        %v1732 = vadd.f32 %v1567, %v1726
        %v1733 = vadd.f32 %v1568, %v1727
        %v1734 = vmul.f32 %v1711, %v1323
        %v1735 = vmul.f32 %v1711, %v1327
        %v1736 = vmul.f32 %v1711, %v1331
        %1740 = vrot.lane.b32.xlu0 %v1734, 121
        %v1741 = vpop.permute.xlu0 %1740
        %1742 = vrot.lane.b32.xlu0 %v1735, 121
        %v1743 = vpop.permute.xlu0 %1742
        %1744 = vrot.lane.b32.xlu0 %v1736, 121
        %v1745 = vpop.permute.xlu0 %1744
        %v1746 = vsel %vm1725, %v1741, %v1743
        %v1747 = vsel %vm1725, %v1743, %v1745
        %v1751 = vadd.f32 %v1586, %v1741
        %v1752 = vadd.f32 %v1587, %v1746
        %v1753 = vadd.f32 %v1588, %v1747
        %v1754 = vmul.f32 %v1711, %v1355
        %v1755 = vmul.f32 %v1711, %v1359
        %v1756 = vmul.f32 %v1711, %v1363
        %1760 = vrot.lane.b32.xlu0 %v1754, 121
        %v1761 = vpop.permute.xlu0 %1760
        %1762 = vrot.lane.b32.xlu0 %v1755, 121
        %v1763 = vpop.permute.xlu0 %1762
        %1764 = vrot.lane.b32.xlu0 %v1756, 121
        %v1765 = vpop.permute.xlu0 %1764
        %v1766 = vsel %vm1725, %v1761, %v1763
        %v1767 = vsel %vm1725, %v1763, %v1765
        %v1771 = vadd.f32 %v1606, %v1761
        %v1772 = vadd.f32 %v1607, %v1766
        %v1773 = vadd.f32 %v1608, %v1767
        %v1774 = vmul.f32 %v1711, %v1387
        %v1775 = vmul.f32 %v1711, %v1391
        %v1776 = vmul.f32 %v1711, %v1395
        %1780 = vrot.lane.b32.xlu0 %v1774, 121
        %v1781 = vpop.permute.xlu0 %1780
        %1782 = vrot.lane.b32.xlu0 %v1775, 121
        %v1783 = vpop.permute.xlu0 %1782
        %1784 = vrot.lane.b32.xlu0 %v1776, 121
        %v1785 = vpop.permute.xlu0 %1784
        %v1786 = vsel %vm1725, %v1781, %v1783
        %v1787 = vsel %vm1725, %v1783, %v1785
        %v1791 = vadd.f32 %v1626, %v1781
        %v1792 = vadd.f32 %v1627, %v1786
        %v1793 = vadd.f32 %v1628, %v1787
        %v1794 = vmul.f32 %v1711, %v1419
        %v1795 = vmul.f32 %v1711, %v1423
        %v1796 = vmul.f32 %v1711, %v1427
        %1800 = vrot.lane.b32.xlu0 %v1794, 121
        %v1801 = vpop.permute.xlu0 %1800
        %1802 = vrot.lane.b32.xlu0 %v1795, 121
        %v1803 = vpop.permute.xlu0 %1802
        %1804 = vrot.lane.b32.xlu0 %v1796, 121
        %v1805 = vpop.permute.xlu0 %1804
        %v1806 = vsel %vm1725, %v1801, %v1803
        %v1807 = vsel %vm1725, %v1803, %v1805
        %v1811 = vadd.f32 %v1646, %v1801
        %v1812 = vadd.f32 %v1647, %v1806
        %v1813 = vadd.f32 %v1648, %v1807
        %v1814 = vmul.f32 %v1711, %v1451
        %v1815 = vmul.f32 %v1711, %v1455
        %v1816 = vmul.f32 %v1711, %v1459
        %1820 = vrot.lane.b32.xlu0 %v1814, 121
        %v1821 = vpop.permute.xlu0 %1820
        %1822 = vrot.lane.b32.xlu0 %v1815, 121
        %v1823 = vpop.permute.xlu0 %1822
        %1824 = vrot.lane.b32.xlu0 %v1816, 121
        %v1825 = vpop.permute.xlu0 %1824
        %v1826 = vsel %vm1725, %v1821, %v1823
        %v1827 = vsel %vm1725, %v1823, %v1825
        %v1831 = vadd.f32 %v1666, %v1821
        %v1832 = vadd.f32 %v1667, %v1826
        %v1833 = vadd.f32 %v1668, %v1827
        %v1834 = vmul.f32 %v1711, %v1483
        %v1835 = vmul.f32 %v1711, %v1487
        %v1836 = vmul.f32 %v1711, %v1491
        %1840 = vrot.lane.b32.xlu0 %v1834, 121
        %v1841 = vpop.permute.xlu0 %1840
        %1842 = vrot.lane.b32.xlu0 %v1835, 121
        %v1843 = vpop.permute.xlu0 %1842
        %1844 = vrot.lane.b32.xlu0 %v1836, 121
        %v1845 = vpop.permute.xlu0 %1844
        %v1846 = vsel %vm1725, %v1841, %v1843
        %v1847 = vsel %vm1725, %v1843, %v1845
        %v1851 = vadd.f32 %v1686, %v1841
        %v1852 = vadd.f32 %v1687, %v1846
        %v1853 = vadd.f32 %v1688, %v1847
        %v1854 = vmul.f32 %v1711, %v1515
        %v1855 = vmul.f32 %v1711, %v1519
        %v1856 = vmul.f32 %v1711, %v1523
        %1860 = vrot.lane.b32.xlu0 %v1854, 121
        %v1861 = vpop.permute.xlu0 %1860
        %1862 = vrot.lane.b32.xlu0 %v1855, 121
        %v1863 = vpop.permute.xlu0 %1862
        %1864 = vrot.lane.b32.xlu0 %v1856, 121
        %v1865 = vpop.permute.xlu0 %1864
        %v1866 = vsel %vm1725, %v1861, %v1863
        %v1867 = vsel %vm1725, %v1863, %v1865
        %v1871 = vadd.f32 %v1706, %v1861
        %v1872 = vadd.f32 %v1707, %v1866
        %v1873 = vadd.f32 %v1708, %v1867
        %1874 = vset.pattern.permute.xlu0 8
        %1875 = vperm.xlu0 %1874, %v501
        %v1876 = vpop.permute.xlu0 %1875
        %v1878 = vmul.f32 %v1876, %v1290
        %v1879 = vmul.f32 %v1876, %v1294
        %v1880 = vmul.f32 %v1876, %v1298
        %1884 = vrot.lane.b32.xlu0 %v1878, 120
        %v1885 = vpop.permute.xlu0 %1884
        %1886 = vrot.lane.b32.xlu0 %v1879, 120
        %v1887 = vpop.permute.xlu0 %1886
        %1888 = vrot.lane.b32.xlu0 %v1880, 120
        %v1889 = vpop.permute.xlu0 %1888
        %vm1890 = vcmask 982016
        %v1891 = vsel %vm1890, %v1885, %v1887
        %v1892 = vsel %vm1890, %v1887, %v1889
        %v1896 = vadd.f32 %v1731, %v1885
        %v1897 = vadd.f32 %v1732, %v1891
        %v1898 = vadd.f32 %v1733, %v1892
        %v1899 = vmul.f32 %v1876, %v1323
        %v1900 = vmul.f32 %v1876, %v1327
        %v1901 = vmul.f32 %v1876, %v1331
        %1905 = vrot.lane.b32.xlu0 %v1899, 120
        %v1906 = vpop.permute.xlu0 %1905
        %1907 = vrot.lane.b32.xlu0 %v1900, 120
        %v1908 = vpop.permute.xlu0 %1907
        %1909 = vrot.lane.b32.xlu0 %v1901, 120
        %v1910 = vpop.permute.xlu0 %1909
        %v1911 = vsel %vm1890, %v1906, %v1908
        %v1912 = vsel %vm1890, %v1908, %v1910
        %v1916 = vadd.f32 %v1751, %v1906
        %v1917 = vadd.f32 %v1752, %v1911
        %v1918 = vadd.f32 %v1753, %v1912
        %v1919 = vmul.f32 %v1876, %v1355
        %v1920 = vmul.f32 %v1876, %v1359
        %v1921 = vmul.f32 %v1876, %v1363
        %1925 = vrot.lane.b32.xlu0 %v1919, 120
        %v1926 = vpop.permute.xlu0 %1925
        %1927 = vrot.lane.b32.xlu0 %v1920, 120
        %v1928 = vpop.permute.xlu0 %1927
        %1929 = vrot.lane.b32.xlu0 %v1921, 120
        %v1930 = vpop.permute.xlu0 %1929
        %v1931 = vsel %vm1890, %v1926, %v1928
        %v1932 = vsel %vm1890, %v1928, %v1930
        %v1936 = vadd.f32 %v1771, %v1926
        %v1937 = vadd.f32 %v1772, %v1931
        %v1938 = vadd.f32 %v1773, %v1932
        %v1939 = vmul.f32 %v1876, %v1387
        %v1940 = vmul.f32 %v1876, %v1391
        %v1941 = vmul.f32 %v1876, %v1395
        %1945 = vrot.lane.b32.xlu0 %v1939, 120
        %v1946 = vpop.permute.xlu0 %1945
        %1947 = vrot.lane.b32.xlu0 %v1940, 120
        %v1948 = vpop.permute.xlu0 %1947
        %1949 = vrot.lane.b32.xlu0 %v1941, 120
        %v1950 = vpop.permute.xlu0 %1949
        %v1951 = vsel %vm1890, %v1946, %v1948
        %v1952 = vsel %vm1890, %v1948, %v1950
        %v1956 = vadd.f32 %v1791, %v1946
        %v1957 = vadd.f32 %v1792, %v1951
        %v1958 = vadd.f32 %v1793, %v1952
        %v1959 = vmul.f32 %v1876, %v1419
        %v1960 = vmul.f32 %v1876, %v1423
        %v1961 = vmul.f32 %v1876, %v1427
        %1965 = vrot.lane.b32.xlu0 %v1959, 120
        %v1966 = vpop.permute.xlu0 %1965
        %1967 = vrot.lane.b32.xlu0 %v1960, 120
        %v1968 = vpop.permute.xlu0 %1967
        %1969 = vrot.lane.b32.xlu0 %v1961, 120
        %v1970 = vpop.permute.xlu0 %1969
        %v1971 = vsel %vm1890, %v1966, %v1968
        %v1972 = vsel %vm1890, %v1968, %v1970
        %v1976 = vadd.f32 %v1811, %v1966
        %v1977 = vadd.f32 %v1812, %v1971
        %v1978 = vadd.f32 %v1813, %v1972
        %v1979 = vmul.f32 %v1876, %v1451
        %v1980 = vmul.f32 %v1876, %v1455
        %v1981 = vmul.f32 %v1876, %v1459
        %1985 = vrot.lane.b32.xlu0 %v1979, 120
        %v1986 = vpop.permute.xlu0 %1985
        %1987 = vrot.lane.b32.xlu0 %v1980, 120
        %v1988 = vpop.permute.xlu0 %1987
        %1989 = vrot.lane.b32.xlu0 %v1981, 120
        %v1990 = vpop.permute.xlu0 %1989
        %v1991 = vsel %vm1890, %v1986, %v1988
        %v1992 = vsel %vm1890, %v1988, %v1990
        %v1996 = vadd.f32 %v1831, %v1986
        %v1997 = vadd.f32 %v1832, %v1991
        %v1998 = vadd.f32 %v1833, %v1992
        %v1999 = vmul.f32 %v1876, %v1483
        %v2000 = vmul.f32 %v1876, %v1487
        %v2001 = vmul.f32 %v1876, %v1491
        %2005 = vrot.lane.b32.xlu0 %v1999, 120
        %v2006 = vpop.permute.xlu0 %2005
        %2007 = vrot.lane.b32.xlu0 %v2000, 120
        %v2008 = vpop.permute.xlu0 %2007
        %2009 = vrot.lane.b32.xlu0 %v2001, 120
        %v2010 = vpop.permute.xlu0 %2009
        %v2011 = vsel %vm1890, %v2006, %v2008
        %v2012 = vsel %vm1890, %v2008, %v2010
        %v2016 = vadd.f32 %v1851, %v2006
        %v2017 = vadd.f32 %v1852, %v2011
        %v2018 = vadd.f32 %v1853, %v2012
        %v2019 = vmul.f32 %v1876, %v1515
        %v2020 = vmul.f32 %v1876, %v1519
        %v2021 = vmul.f32 %v1876, %v1523
        %2025 = vrot.lane.b32.xlu0 %v2019, 120
        %v2026 = vpop.permute.xlu0 %2025
        %2027 = vrot.lane.b32.xlu0 %v2020, 120
        %v2028 = vpop.permute.xlu0 %2027
        %2029 = vrot.lane.b32.xlu0 %v2021, 120
        %v2030 = vpop.permute.xlu0 %2029
        %v2031 = vsel %vm1890, %v2026, %v2028
        %v2032 = vsel %vm1890, %v2028, %v2030
        %v2036 = vadd.f32 %v1871, %v2026
        %v2037 = vadd.f32 %v1872, %v2031
        %v2038 = vadd.f32 %v1873, %v2032
        %2042 = vrot.lane.b32.xlu0 %v1896, 4
        %v2043 = vpop.permute.xlu0 %2042
        %2044 = vrot.lane.b32.xlu0 %v1897, 4
        %v2045 = vpop.permute.xlu0 %2044
        %2046 = vrot.lane.b32.xlu0 %v1898, 4
        %v2047 = vpop.permute.xlu0 %2046
        %vm2048 = vcmask 31744
        %v2049 = vsel %vm2048, %v2043, %v2045
        %v2050 = vsel %vm2048, %v2045, %v2047
        %2053 = vst [vmem:[%s230] sm:$0xff] %v2049
        %2054 = vst [vmem:[%s230 + $0x8] sm:$0xff] %v2050
        %2058 = vrot.lane.b32.xlu0 %v1916, 4
        %v2059 = vpop.permute.xlu0 %2058
        %2060 = vrot.lane.b32.xlu0 %v1917, 4
        %v2061 = vpop.permute.xlu0 %2060
        %2062 = vrot.lane.b32.xlu0 %v1918, 4
        %v2063 = vpop.permute.xlu0 %2062
        %v2064 = vsel %vm2048, %v2059, %v2061
        %v2065 = vsel %vm2048, %v2061, %v2063
        %s2068 = scalar_lea.vmem %s230, 16 [#allocation6]
        %2069 = vst [vmem:[%s2068] sm:$0xff] %v2064
        %2070 = vst [vmem:[%s2068 + $0x8] sm:$0xff] %v2065
        %2074 = vrot.lane.b32.xlu0 %v1936, 4
        %v2075 = vpop.permute.xlu0 %2074
        %2076 = vrot.lane.b32.xlu0 %v1937, 4
        %v2077 = vpop.permute.xlu0 %2076
        %2078 = vrot.lane.b32.xlu0 %v1938, 4
        %v2079 = vpop.permute.xlu0 %2078
        %v2080 = vsel %vm2048, %v2075, %v2077
        %v2081 = vsel %vm2048, %v2077, %v2079
        %s2084 = scalar_lea.vmem %s230, 32 [#allocation6]
        %2085 = vst [vmem:[%s2084] sm:$0xff] %v2080
        %2086 = vst [vmem:[%s2084 + $0x8] sm:$0xff] %v2081
        %2090 = vrot.lane.b32.xlu0 %v1956, 4
        %v2091 = vpop.permute.xlu0 %2090
        %2092 = vrot.lane.b32.xlu0 %v1957, 4
        %v2093 = vpop.permute.xlu0 %2092
        %2094 = vrot.lane.b32.xlu0 %v1958, 4
        %v2095 = vpop.permute.xlu0 %2094
        %v2096 = vsel %vm2048, %v2091, %v2093
        %v2097 = vsel %vm2048, %v2093, %v2095
        %s2100 = scalar_lea.vmem %s230, 48 [#allocation6]
        %2101 = vst [vmem:[%s2100] sm:$0xff] %v2096
        %2102 = vst [vmem:[%s2100 + $0x8] sm:$0xff] %v2097
        %2106 = vrot.lane.b32.xlu0 %v1976, 4
        %v2107 = vpop.permute.xlu0 %2106
        %2108 = vrot.lane.b32.xlu0 %v1977, 4
        %v2109 = vpop.permute.xlu0 %2108
        %2110 = vrot.lane.b32.xlu0 %v1978, 4
        %v2111 = vpop.permute.xlu0 %2110
        %v2112 = vsel %vm2048, %v2107, %v2109
        %v2113 = vsel %vm2048, %v2109, %v2111
        %s2116 = scalar_lea.vmem %s230, 64 [#allocation6]
        %2117 = vst [vmem:[%s2116] sm:$0xff] %v2112
        %2118 = vst [vmem:[%s2116 + $0x8] sm:$0xff] %v2113
        %2122 = vrot.lane.b32.xlu0 %v1996, 4
        %v2123 = vpop.permute.xlu0 %2122
        %2124 = vrot.lane.b32.xlu0 %v1997, 4
        %v2125 = vpop.permute.xlu0 %2124
        %2126 = vrot.lane.b32.xlu0 %v1998, 4
        %v2127 = vpop.permute.xlu0 %2126
        %v2128 = vsel %vm2048, %v2123, %v2125
        %v2129 = vsel %vm2048, %v2125, %v2127
        %s2132 = scalar_lea.vmem %s230, 80 [#allocation6]
        %2133 = vst [vmem:[%s2132] sm:$0xff] %v2128
        %2134 = vst [vmem:[%s2132 + $0x8] sm:$0xff] %v2129
        %2138 = vrot.lane.b32.xlu0 %v2016, 4
        %v2139 = vpop.permute.xlu0 %2138
        %2140 = vrot.lane.b32.xlu0 %v2017, 4
        %v2141 = vpop.permute.xlu0 %2140
        %2142 = vrot.lane.b32.xlu0 %v2018, 4
        %v2143 = vpop.permute.xlu0 %2142
        %v2144 = vsel %vm2048, %v2139, %v2141
        %v2145 = vsel %vm2048, %v2141, %v2143
        %s2148 = scalar_lea.vmem %s230, 96 [#allocation6]
        %2149 = vst [vmem:[%s2148] sm:$0xff] %v2144
        %2150 = vst [vmem:[%s2148 + $0x8] sm:$0xff] %v2145
        %2154 = vrot.lane.b32.xlu0 %v2036, 4
        %v2155 = vpop.permute.xlu0 %2154
        %2156 = vrot.lane.b32.xlu0 %v2037, 4
        %v2157 = vpop.permute.xlu0 %2156
        %2158 = vrot.lane.b32.xlu0 %v2038, 4
        %v2159 = vpop.permute.xlu0 %2158
        %v2160 = vsel %vm2048, %v2155, %v2157
        %v2161 = vsel %vm2048, %v2157, %v2159
        %s2164 = scalar_lea.vmem %s230, 112 [#allocation6]
        %2165 = vst [vmem:[%s2164] sm:$0xff] %v2160
        %2166 = vst [vmem:[%s2164 + $0x8] sm:$0xff] %v2161
        %s2167 = sand.u32 %s138, 1
        %s2168 = scalar_lea.sflag [#allocation5], %s2167
        %s2169 = sand.u32 %s138, 1
        %s2170 = smul.addr %s2169, 128
        %s2171 = scalar_lea.vmem [#allocation6], %s2170
        // Predicated region
        $region45: #{tpu_custom_call.1} parent=39 // pred_check
          %p2172 = pneg %p148
        $region46: #{tpu_custom_call.1} parent=39 // pred_check_branch
          %2174 = sbr.rel (%p2172) target = $region48
        $region47: #{tpu_custom_call.1} parent=39 // pred_region
          %s2175 = smul.u32 8, %s20
          %s2177 = ssub.s32 2048, 2048
          %2178 = vsyncadd %s2168, %s2177
          %s2179 = smul.addr %s2175, 2
          %s2180 = smul.addr %s2179, 128
          %s2181 = scalar_lea.hbm %s5, %s2180
          %s2182 = sshll.u32 %s2171, 4
          %s2183 = int_to_ptr.vmem [resolvable:$true] %s2182
          %2188 = dma.vmem_to_hbm [thread:$0]  %s2183, 2048, %s2181, %s2168, 256, 256, 16
        $region48: #{tpu_custom_call.1} parent=39 // pred_fallthru
          _
      $region40: #{tpu_custom_call.1} parent=5 // pred_fallthru
        _
      %p2189 = scmp.le.s32.totalorder 2, %s15
      // Predicated region
      $region49: #{tpu_custom_call.1} parent=5 // pred_check
        %p2190 = pneg %p2189
      $region50: #{tpu_custom_call.1} parent=5 // pred_check_branch
        %2192 = sbr.rel (%p2190) target = $region52
      $region51: #{tpu_custom_call.1} parent=5 // pred_region
        %s2193 = ssub.s32 %s15, 2
        // Predicated region
        $region53: #{tpu_custom_call.1} parent=51 // pred_check
          %p2194 = pneg %p154
        $region54: #{tpu_custom_call.1} parent=51 // pred_check_branch
          %2196 = sbr.rel (%p2194) target = $region56
        $region55: #{tpu_custom_call.1} parent=51 // pred_region
          %s2197 = sand.u32 %s139, 1
          %s2198 = scalar_lea.sflag [#allocation5], %s2197
          %s2199 = sand.u32 %s139, 1
          %s2200 = smul.addr %s2199, 128
          %s2201 = scalar_lea.vmem [#allocation6], %s2200
          %2202 = dma.done %s2198, 2048
        $region56: #{tpu_custom_call.1} parent=51 // pred_fallthru
          _
      $region52: #{tpu_custom_call.1} parent=5 // pred_fallthru
        _
    $region6: #{tpu_custom_call.1} parent=1 // loop_footer
      %s19 = sadd.s32 1, %s15
    $region7: #{tpu_custom_call.1} parent=1 // loop_footer_branch
      %14 = sbr.rel target = $region3
    $region8: #{tpu_custom_call.1} parent=1 // loop_exit
      _
    %2203 = vsyncpa [#allocation4], 1
    %s2204 = scalar_lea.sflag [#allocation4], 1
    %2205 = vsyncpa %s2204, 1
    %2206 = vsyncpa [#allocation5], 1
    %s2207 = scalar_lea.sflag [#allocation5], 1
    %2208 = vsyncpa %s2207, 1

</llo_original>
